<compile_context>
chip_gen: v7x
topology: tpu7x:2x2x1
jax: 0.10.0
libtpu: 0.0.40
codegen_flags: <defaults>
</compile_context>

<pallas_src>
import functools

import jax
import jax.numpy as jnp
from jax import lax
from jax.experimental import pallas as pl
from jax.experimental.pallas import tpu as pltpu


# ----------------------------------------------------------------------------
# Fused kernel: whole-batch multi-head causal attention + output projection.
#   grid = (1,)  -- single step, everything resident in VMEM.
#   x block:   (B*T, C)   f32, batch flattened into sublane rows
#   wq/wk/wv:  (H, C, hs) bf16, per-head, scale folded into wq
#   wp block:  (H, hs, C) bf16, per-head rows of the projection
#   bp block:  (1, C)     f32
#   out block: (B*T, C)
# ----------------------------------------------------------------------------
def _mha_fused_kernel(x_ref, wq_ref, wk_ref, wv_ref, wp_ref, bp_ref, o_ref, *,
                      n_heads, batch, seq):
    T = seq
    x = x_ref[...]                                   # (B*T, C) f32
    x_b = x.astype(jnp.bfloat16)                     # single cast, reused by all heads

    # Causal mask, computed once and shared by every (batch, head) pair.
    # Large finite fill instead of -inf so a fully-masked row cannot NaN.
    row = lax.broadcasted_iota(jnp.int32, (T, T), 0)
    col = lax.broadcasted_iota(jnp.int32, (T, T), 1)
    causal = col <= row
    neg_big = jnp.float32(-1e30)

    head_contribs = []
    for h in range(n_heads):                         # static unroll (H=4), heads independent
        # Per-head Q/K/V: each lands in its own tile -> no lane slicing.
        # Q weight carries the C**-0.5 scale already.
        q_h = jnp.dot(x_b, wq_ref[h], preferred_element_type=jnp.float32)   # (B*T, hs)
        k_h = jnp.dot(x_b, wk_ref[h], preferred_element_type=jnp.float32)   # (B*T, hs)
        v_h = jnp.dot(x_b, wv_ref[h], preferred_element_type=jnp.float32)   # (B*T, hs)

        pv_rows = []
        for b in range(batch):                       # static unroll (B=2)
            r0 = b * T                               # f32 sublane-aligned (multiple of 8)
            qb = q_h[r0:r0 + T, :].astype(jnp.bfloat16)   # (T, hs)
            kb = k_h[r0:r0 + T, :].astype(jnp.bfloat16)   # (T, hs)
            vb = v_h[r0:r0 + T, :].astype(jnp.bfloat16)   # (T, hs)

            # qb @ kb.T without materializing a transpose: contract last axes.
            s = lax.dot_general(qb, kb, (((1,), (1,)), ((), ())),
                                preferred_element_type=jnp.float32)          # (T, T) f32
            s = jnp.where(causal, s, neg_big)

            # Numerically stable softmax in f32 (v5e has no bf16 VPU/EUP).
            m = jnp.max(s, axis=-1, keepdims=True)
            p = jnp.exp(s - m)
            denom = jnp.sum(p, axis=-1, keepdims=True)
            p = p * pl.reciprocal(denom, approx=False)   # EUP slot has slack -> exact

            pv_rows.append(
                jnp.dot(p.astype(jnp.bfloat16), vb,
                        preferred_element_type=jnp.float32))                 # (T, hs)

        # Stack the batch rows back (f32, tile-aligned sublane concat) and fold
        # this head's slice of the output projection -- removes the head concat
        # and all lane placement of head outputs.
        pv_all = jnp.concatenate(pv_rows, axis=0).astype(jnp.bfloat16)       # (B*T, hs)
        head_contribs.append(
            jnp.dot(pv_all, wp_ref[h], preferred_element_type=jnp.float32))  # (B*T, C)

    acc = head_contribs[0]
    for c in head_contribs[1:]:
        acc = acc + c
    o_ref[...] = (acc + bp_ref[...]).astype(o_ref.dtype)


def prepare_weights(wq, wk, wv, wp, bp):
    """One-time (init) weight prep: per-head layout, scale fold, bf16 cast.

    wq/wk/wv: (H, hs, C) torch-Linear weights (y = x @ W.T);
    wp: (C, C); bp: (C,).
    Returns kernel-ready (wq_t, wk_t, wv_t, wp_t, bp2).
    """
    H, hs, C = wq.shape
    scale = float(C) ** -0.5                         # n_embd**-0.5, per the module
    # x @ wq[h].T == x @ transpose(wq[h]); fold the score scale into Q.
    wq_t = (jnp.transpose(wq, (0, 2, 1)) * scale).astype(jnp.bfloat16)   # (H, C, hs)
    wk_t = jnp.transpose(wk, (0, 2, 1)).astype(jnp.bfloat16)             # (H, C, hs)
    wv_t = jnp.transpose(wv, (0, 2, 1)).astype(jnp.bfloat16)             # (H, C, hs)
    # y @ wp.T == sum_h head_h @ wp.T[h*hs:(h+1)*hs, :]  -> group rows per head.
    wp_t = wp.T.reshape(H, hs, C).astype(jnp.bfloat16)                   # (H, hs, C)
    bp2 = bp.reshape(1, C).astype(jnp.float32)
    return wq_t, wk_t, wv_t, wp_t, bp2


def multi_head_attention(x, prepped):
    """x: (B, T, C); prepped: output of prepare_weights()."""
    wq_t, wk_t, wv_t, wp_t, bp2 = prepped
    B, T, C = x.shape
    H, _, hs = wq_t.shape
    assert H * hs == C

    x_flat = x.reshape(B * T, C)                     # contiguous reshape, metadata only

    kernel = functools.partial(_mha_fused_kernel, n_heads=H, batch=B, seq=T)

    out_flat = pl.pallas_call(
        kernel,
        out_shape=jax.ShapeDtypeStruct((B * T, C), x.dtype),
        grid_spec=pltpu.PrefetchScalarGridSpec(
            num_scalar_prefetch=0,
            grid=(1,),                               # single step: whole batch at once
            in_specs=[
                pl.BlockSpec((B * T, C), lambda i: (0, 0)),
                pl.BlockSpec((H, C, hs), lambda i: (0, 0, 0)),
                pl.BlockSpec((H, C, hs), lambda i: (0, 0, 0)),
                pl.BlockSpec((H, C, hs), lambda i: (0, 0, 0)),
                pl.BlockSpec((H, hs, C), lambda i: (0, 0, 0)),
                pl.BlockSpec((1, C), lambda i: (0, 0)),
            ],
            out_specs=pl.BlockSpec((B * T, C), lambda i: (0, 0)),
        ),
        compiler_params=pltpu.CompilerParams(
            dimension_semantics=("arbitrary",)),
    )(x_flat, wq_t, wk_t, wv_t, wp_t, bp2)

    return out_flat.reshape(B, T, C)


def _reference(x, wq, wk, wv, wp, bp):
    """Pure-JAX f32 reference mirroring the PyTorch forward (eval mode)."""
    B, T, C = x.shape
    H, hs, _ = wq.shape
    outs = []
    tril = jnp.tril(jnp.ones((T, T)))
    for h in range(H):
        q = x @ wq[h].T
        k = x @ wk[h].T
        v = x @ wv[h].T
        wei = (q @ jnp.swapaxes(k, -1, -2)) * (C ** -0.5)
        wei = jnp.where(tril == 0, -jnp.inf, wei)
        wei = jax.nn.softmax(wei, axis=-1)
        outs.append(wei @ v)
    y = jnp.concatenate(outs, axis=-1)
    return y @ wp.T + bp


if __name__ == "__main__":
    # Small shapes consistent with the module:
    # block_size (T) = 8, n_embd (C) = 32, n_heads (H) = 4 -> head_size = 8,
    # batch B = 2, dropout = 0.0 (inference).
    B, T, C, H = 2, 8, 32, 4
    hs = C // H

    key = jax.random.PRNGKey(0)
    kx, kq, kk, kv, kp, kb = jax.random.split(key, 6)

    x = jax.random.normal(kx, (B, T, C), dtype=jnp.float32)
    wq = jax.random.normal(kq, (H, hs, C), dtype=jnp.float32) * 0.1
    wk = jax.random.normal(kk, (H, hs, C), dtype=jnp.float32) * 0.1
    wv = jax.random.normal(kv, (H, hs, C), dtype=jnp.float32) * 0.1
    wp = jax.random.normal(kp, (C, C), dtype=jnp.float32) * 0.1
    bp = jax.random.normal(kb, (C,), dtype=jnp.float32) * 0.1

    # Weight prep happens ONCE (init-time), not per forward call.
    prepped = jax.block_until_ready(prepare_weights(wq, wk, wv, wp, bp))

    out = multi_head_attention(x, prepped)
    out = jax.block_until_ready(out)

    ref = _reference(x, wq, wk, wv, wp, bp)
    assert out.shape == (B, T, C)
    # bf16 MXU matmuls -> loosened tolerance vs f32 reference.
    assert jnp.allclose(out, ref, atol=2e-2, rtol=2e-2), "mismatch vs reference"

    print("KERNEL_OK")
</pallas_src>

<mosaic_0001>
module attributes {stable_mosaic.version = 11 : i64} {
  func.func @_mha_fused_kernel(%arg0: i32, %arg1: memref<16x32xf32, #tpu.memory_space<vmem>>, %arg2: memref<4x32x8xbf16, #tpu.memory_space<vmem>>, %arg3: memref<4x32x8xbf16, #tpu.memory_space<vmem>>, %arg4: memref<4x32x8xbf16, #tpu.memory_space<vmem>>, %arg5: memref<4x8x32xbf16, #tpu.memory_space<vmem>>, %arg6: memref<1x32xf32, #tpu.memory_space<vmem>>, %arg7: memref<16x32xf32, #tpu.memory_space<vmem>>) attributes {dimension_semantics = [#tpu.dimension_semantics<arbitrary>], iteration_bounds = array<i64: 1>, scalar_prefetch = 0 : i64, scratch_operands = 0 : i64, tpu.core_type = #tpu.core_type<tc>, window_params = [{pipeline_mode = #tpu.pipeline_mode<synchronous>, transform_indices = @transform_0, window_bounds = array<i64: 16, 32>}, {pipeline_mode = #tpu.pipeline_mode<synchronous>, transform_indices = @transform_1, window_bounds = array<i64: 4, 32, 8>}, {pipeline_mode = #tpu.pipeline_mode<synchronous>, transform_indices = @transform_2, window_bounds = array<i64: 4, 32, 8>}, {pipeline_mode = #tpu.pipeline_mode<synchronous>, transform_indices = @transform_3, window_bounds = array<i64: 4, 32, 8>}, {pipeline_mode = #tpu.pipeline_mode<synchronous>, transform_indices = @transform_4, window_bounds = array<i64: 4, 8, 32>}, {pipeline_mode = #tpu.pipeline_mode<synchronous>, transform_indices = @transform_5, window_bounds = array<i64: 1, 32>}, {pipeline_mode = #tpu.pipeline_mode<synchronous>, transform_indices = @transform_6, window_bounds = array<i64: 16, 32>}]} {
    %c0 = arith.constant 0 : index
    %c0_0 = arith.constant 0 : index
    %0 = vector.load %arg1[%c0, %c0_0] : memref<16x32xf32, #tpu.memory_space<vmem>>, vector<16x32xf32>
    %1 = arith.truncf %0 : vector<16x32xf32> to vector<16x32xbf16>
    %2 = tpu.iota {dimensions = array<i32: 0>} : vector<8x8xi32>
    %3 = tpu.iota {dimensions = array<i32: 1>} : vector<8x8xi32>
    %4 = arith.cmpi sle, %3, %2 : vector<8x8xi32>
    %c0_1 = arith.constant 0 : index
    %c0_2 = arith.constant 0 : index
    %c0_3 = arith.constant 0 : index
    %5 = vector.load %arg2[%c0_1, %c0_2, %c0_3] : memref<4x32x8xbf16, #tpu.memory_space<vmem>>, vector<1x32x8xbf16>
    %6 = vector.shape_cast %5 : vector<1x32x8xbf16> to vector<32x8xbf16>
    %cst = arith.constant dense<0.000000e+00> : vector<16x8xf32>
    %7 = tpu.matmul %1, %6, %cst {dimension_numbers = #tpu.dot_dimension_numbers<[1], [0], [0], [1], [0, 0, 1, 1], [], []>} : vector<16x32xbf16>, vector<32x8xbf16>, vector<16x8xf32> -> vector<16x8xf32>
    %c0_4 = arith.constant 0 : index
    %c0_5 = arith.constant 0 : index
    %c0_6 = arith.constant 0 : index
    %8 = vector.load %arg3[%c0_4, %c0_5, %c0_6] : memref<4x32x8xbf16, #tpu.memory_space<vmem>>, vector<1x32x8xbf16>
    %9 = vector.shape_cast %8 : vector<1x32x8xbf16> to vector<32x8xbf16>
    %cst_7 = arith.constant dense<0.000000e+00> : vector<16x8xf32>
    %10 = tpu.matmul %1, %9, %cst_7 {dimension_numbers = #tpu.dot_dimension_numbers<[1], [0], [0], [1], [0, 0, 1, 1], [], []>} : vector<16x32xbf16>, vector<32x8xbf16>, vector<16x8xf32> -> vector<16x8xf32>
    %c0_8 = arith.constant 0 : index
    %c0_9 = arith.constant 0 : index
    %c0_10 = arith.constant 0 : index
    %11 = vector.load %arg4[%c0_8, %c0_9, %c0_10] : memref<4x32x8xbf16, #tpu.memory_space<vmem>>, vector<1x32x8xbf16>
    %12 = vector.shape_cast %11 : vector<1x32x8xbf16> to vector<32x8xbf16>
    %cst_11 = arith.constant dense<0.000000e+00> : vector<16x8xf32>
    %13 = tpu.matmul %1, %12, %cst_11 {dimension_numbers = #tpu.dot_dimension_numbers<[1], [0], [0], [1], [0, 0, 1, 1], [], []>} : vector<16x32xbf16>, vector<32x8xbf16>, vector<16x8xf32> -> vector<16x8xf32>
    %14 = vector.extract_strided_slice %7 {offsets = [0, 0], sizes = [8, 8], strides = [1, 1]} : vector<16x8xf32> to vector<8x8xf32>
    %15 = arith.truncf %14 : vector<8x8xf32> to vector<8x8xbf16>
    %16 = vector.extract_strided_slice %10 {offsets = [0, 0], sizes = [8, 8], strides = [1, 1]} : vector<16x8xf32> to vector<8x8xf32>
    %17 = arith.truncf %16 : vector<8x8xf32> to vector<8x8xbf16>
    %18 = vector.extract_strided_slice %13 {offsets = [0, 0], sizes = [8, 8], strides = [1, 1]} : vector<16x8xf32> to vector<8x8xf32>
    %19 = arith.truncf %18 : vector<8x8xf32> to vector<8x8xbf16>
    %cst_12 = arith.constant dense<0.000000e+00> : vector<8x8xf32>
    %20 = tpu.matmul %15, %17, %cst_12 {dimension_numbers = #tpu.dot_dimension_numbers<[1], [1], [0], [0], [0, 0, 1, 0], [], []>} : vector<8x8xbf16>, vector<8x8xbf16>, vector<8x8xf32> -> vector<8x8xf32>
    %cst_13 = arith.constant -1.000000e+30 : f32
    %21 = vector.broadcast %cst_13 : f32 to vector<8x8xf32>
    %22 = arith.select %4, %20, %21 : vector<8x8xi1>, vector<8x8xf32>
    %cst_14 = arith.constant dense<0xFF800000> : vector<8xf32>
    %23 = vector.multi_reduction <maximumf>, %22, %cst_14 [1] : vector<8x8xf32> to vector<8xf32>
    %24 = vector.shape_cast %23 : vector<8xf32> to vector<8x1xf32>
    %25 = vector.broadcast %24 : vector<8x1xf32> to vector<8x8xf32>
    %26 = arith.subf %22, %25 : vector<8x8xf32>
    %27 = math.exp %26 : vector<8x8xf32>
    %cst_15 = arith.constant dense<0.000000e+00> : vector<8xf32>
    %28 = vector.multi_reduction <add>, %27, %cst_15 [1] : vector<8x8xf32> to vector<8xf32>
    %29 = vector.shape_cast %28 : vector<8xf32> to vector<8x1xf32>
    %30 = tpu.reciprocal %29 : vector<8x1xf32> -> vector<8x1xf32>
    %31 = vector.broadcast %30 : vector<8x1xf32> to vector<8x8xf32>
    %32 = arith.mulf %27, %31 : vector<8x8xf32>
    %33 = arith.truncf %32 : vector<8x8xf32> to vector<8x8xbf16>
    %cst_16 = arith.constant dense<0.000000e+00> : vector<8x8xf32>
    %34 = tpu.matmul %33, %19, %cst_16 {dimension_numbers = #tpu.dot_dimension_numbers<[1], [0], [0], [1], [0, 0, 1, 1], [], []>} : vector<8x8xbf16>, vector<8x8xbf16>, vector<8x8xf32> -> vector<8x8xf32>
    %35 = vector.extract_strided_slice %7 {offsets = [8, 0], sizes = [8, 8], strides = [1, 1]} : vector<16x8xf32> to vector<8x8xf32>
    %36 = arith.truncf %35 : vector<8x8xf32> to vector<8x8xbf16>
    %37 = vector.extract_strided_slice %10 {offsets = [8, 0], sizes = [8, 8], strides = [1, 1]} : vector<16x8xf32> to vector<8x8xf32>
    %38 = arith.truncf %37 : vector<8x8xf32> to vector<8x8xbf16>
    %39 = vector.extract_strided_slice %13 {offsets = [8, 0], sizes = [8, 8], strides = [1, 1]} : vector<16x8xf32> to vector<8x8xf32>
    %40 = arith.truncf %39 : vector<8x8xf32> to vector<8x8xbf16>
    %cst_17 = arith.constant dense<0.000000e+00> : vector<8x8xf32>
    %41 = tpu.matmul %36, %38, %cst_17 {dimension_numbers = #tpu.dot_dimension_numbers<[1], [1], [0], [0], [0, 0, 1, 0], [], []>} : vector<8x8xbf16>, vector<8x8xbf16>, vector<8x8xf32> -> vector<8x8xf32>
    %cst_18 = arith.constant -1.000000e+30 : f32
    %42 = vector.broadcast %cst_18 : f32 to vector<8x8xf32>
    %43 = arith.select %4, %41, %42 : vector<8x8xi1>, vector<8x8xf32>
    %cst_19 = arith.constant dense<0xFF800000> : vector<8xf32>
    %44 = vector.multi_reduction <maximumf>, %43, %cst_19 [1] : vector<8x8xf32> to vector<8xf32>
    %45 = vector.shape_cast %44 : vector<8xf32> to vector<8x1xf32>
    %46 = vector.broadcast %45 : vector<8x1xf32> to vector<8x8xf32>
    %47 = arith.subf %43, %46 : vector<8x8xf32>
    %48 = math.exp %47 : vector<8x8xf32>
    %cst_20 = arith.constant dense<0.000000e+00> : vector<8xf32>
    %49 = vector.multi_reduction <add>, %48, %cst_20 [1] : vector<8x8xf32> to vector<8xf32>
    %50 = vector.shape_cast %49 : vector<8xf32> to vector<8x1xf32>
    %51 = tpu.reciprocal %50 : vector<8x1xf32> -> vector<8x1xf32>
    %52 = vector.broadcast %51 : vector<8x1xf32> to vector<8x8xf32>
    %53 = arith.mulf %48, %52 : vector<8x8xf32>
    %54 = arith.truncf %53 : vector<8x8xf32> to vector<8x8xbf16>
    %cst_21 = arith.constant dense<0.000000e+00> : vector<8x8xf32>
    %55 = tpu.matmul %54, %40, %cst_21 {dimension_numbers = #tpu.dot_dimension_numbers<[1], [0], [0], [1], [0, 0, 1, 1], [], []>} : vector<8x8xbf16>, vector<8x8xbf16>, vector<8x8xf32> -> vector<8x8xf32>
    %56 = tpu.concatenate %34, %55 in 0 : vector<8x8xf32>, vector<8x8xf32> -> vector<16x8xf32>
    %57 = arith.truncf %56 : vector<16x8xf32> to vector<16x8xbf16>
    %c0_22 = arith.constant 0 : index
    %c0_23 = arith.constant 0 : index
    %c0_24 = arith.constant 0 : index
    %58 = vector.load %arg5[%c0_22, %c0_23, %c0_24] : memref<4x8x32xbf16, #tpu.memory_space<vmem>>, vector<1x8x32xbf16>
    %59 = vector.shape_cast %58 : vector<1x8x32xbf16> to vector<8x32xbf16>
    %cst_25 = arith.constant dense<0.000000e+00> : vector<16x32xf32>
    %60 = tpu.matmul %57, %59, %cst_25 {dimension_numbers = #tpu.dot_dimension_numbers<[1], [0], [0], [1], [0, 0, 1, 1], [], []>} : vector<16x8xbf16>, vector<8x32xbf16>, vector<16x32xf32> -> vector<16x32xf32>
    %c1 = arith.constant 1 : index
    %c0_26 = arith.constant 0 : index
    %c0_27 = arith.constant 0 : index
    %61 = vector.load %arg2[%c1, %c0_26, %c0_27] : memref<4x32x8xbf16, #tpu.memory_space<vmem>>, vector<1x32x8xbf16>
    %62 = vector.shape_cast %61 : vector<1x32x8xbf16> to vector<32x8xbf16>
    %cst_28 = arith.constant dense<0.000000e+00> : vector<16x8xf32>
    %63 = tpu.matmul %1, %62, %cst_28 {dimension_numbers = #tpu.dot_dimension_numbers<[1], [0], [0], [1], [0, 0, 1, 1], [], []>} : vector<16x32xbf16>, vector<32x8xbf16>, vector<16x8xf32> -> vector<16x8xf32>
    %c1_29 = arith.constant 1 : index
    %c0_30 = arith.constant 0 : index
    %c0_31 = arith.constant 0 : index
    %64 = vector.load %arg3[%c1_29, %c0_30, %c0_31] : memref<4x32x8xbf16, #tpu.memory_space<vmem>>, vector<1x32x8xbf16>
    %65 = vector.shape_cast %64 : vector<1x32x8xbf16> to vector<32x8xbf16>
    %cst_32 = arith.constant dense<0.000000e+00> : vector<16x8xf32>
    %66 = tpu.matmul %1, %65, %cst_32 {dimension_numbers = #tpu.dot_dimension_numbers<[1], [0], [0], [1], [0, 0, 1, 1], [], []>} : vector<16x32xbf16>, vector<32x8xbf16>, vector<16x8xf32> -> vector<16x8xf32>
    %c1_33 = arith.constant 1 : index
    %c0_34 = arith.constant 0 : index
    %c0_35 = arith.constant 0 : index
    %67 = vector.load %arg4[%c1_33, %c0_34, %c0_35] : memref<4x32x8xbf16, #tpu.memory_space<vmem>>, vector<1x32x8xbf16>
    %68 = vector.shape_cast %67 : vector<1x32x8xbf16> to vector<32x8xbf16>
    %cst_36 = arith.constant dense<0.000000e+00> : vector<16x8xf32>
    %69 = tpu.matmul %1, %68, %cst_36 {dimension_numbers = #tpu.dot_dimension_numbers<[1], [0], [0], [1], [0, 0, 1, 1], [], []>} : vector<16x32xbf16>, vector<32x8xbf16>, vector<16x8xf32> -> vector<16x8xf32>
    %70 = vector.extract_strided_slice %63 {offsets = [0, 0], sizes = [8, 8], strides = [1, 1]} : vector<16x8xf32> to vector<8x8xf32>
    %71 = arith.truncf %70 : vector<8x8xf32> to vector<8x8xbf16>
    %72 = vector.extract_strided_slice %66 {offsets = [0, 0], sizes = [8, 8], strides = [1, 1]} : vector<16x8xf32> to vector<8x8xf32>
    %73 = arith.truncf %72 : vector<8x8xf32> to vector<8x8xbf16>
    %74 = vector.extract_strided_slice %69 {offsets = [0, 0], sizes = [8, 8], strides = [1, 1]} : vector<16x8xf32> to vector<8x8xf32>
    %75 = arith.truncf %74 : vector<8x8xf32> to vector<8x8xbf16>
    %cst_37 = arith.constant dense<0.000000e+00> : vector<8x8xf32>
    %76 = tpu.matmul %71, %73, %cst_37 {dimension_numbers = #tpu.dot_dimension_numbers<[1], [1], [0], [0], [0, 0, 1, 0], [], []>} : vector<8x8xbf16>, vector<8x8xbf16>, vector<8x8xf32> -> vector<8x8xf32>
    %cst_38 = arith.constant -1.000000e+30 : f32
    %77 = vector.broadcast %cst_38 : f32 to vector<8x8xf32>
    %78 = arith.select %4, %76, %77 : vector<8x8xi1>, vector<8x8xf32>
    %cst_39 = arith.constant dense<0xFF800000> : vector<8xf32>
    %79 = vector.multi_reduction <maximumf>, %78, %cst_39 [1] : vector<8x8xf32> to vector<8xf32>
    %80 = vector.shape_cast %79 : vector<8xf32> to vector<8x1xf32>
    %81 = vector.broadcast %80 : vector<8x1xf32> to vector<8x8xf32>
    %82 = arith.subf %78, %81 : vector<8x8xf32>
    %83 = math.exp %82 : vector<8x8xf32>
    %cst_40 = arith.constant dense<0.000000e+00> : vector<8xf32>
    %84 = vector.multi_reduction <add>, %83, %cst_40 [1] : vector<8x8xf32> to vector<8xf32>
    %85 = vector.shape_cast %84 : vector<8xf32> to vector<8x1xf32>
    %86 = tpu.reciprocal %85 : vector<8x1xf32> -> vector<8x1xf32>
    %87 = vector.broadcast %86 : vector<8x1xf32> to vector<8x8xf32>
    %88 = arith.mulf %83, %87 : vector<8x8xf32>
    %89 = arith.truncf %88 : vector<8x8xf32> to vector<8x8xbf16>
    %cst_41 = arith.constant dense<0.000000e+00> : vector<8x8xf32>
    %90 = tpu.matmul %89, %75, %cst_41 {dimension_numbers = #tpu.dot_dimension_numbers<[1], [0], [0], [1], [0, 0, 1, 1], [], []>} : vector<8x8xbf16>, vector<8x8xbf16>, vector<8x8xf32> -> vector<8x8xf32>
    %91 = vector.extract_strided_slice %63 {offsets = [8, 0], sizes = [8, 8], strides = [1, 1]} : vector<16x8xf32> to vector<8x8xf32>
    %92 = arith.truncf %91 : vector<8x8xf32> to vector<8x8xbf16>
    %93 = vector.extract_strided_slice %66 {offsets = [8, 0], sizes = [8, 8], strides = [1, 1]} : vector<16x8xf32> to vector<8x8xf32>
    %94 = arith.truncf %93 : vector<8x8xf32> to vector<8x8xbf16>
    %95 = vector.extract_strided_slice %69 {offsets = [8, 0], sizes = [8, 8], strides = [1, 1]} : vector<16x8xf32> to vector<8x8xf32>
    %96 = arith.truncf %95 : vector<8x8xf32> to vector<8x8xbf16>
    %cst_42 = arith.constant dense<0.000000e+00> : vector<8x8xf32>
    %97 = tpu.matmul %92, %94, %cst_42 {dimension_numbers = #tpu.dot_dimension_numbers<[1], [1], [0], [0], [0, 0, 1, 0], [], []>} : vector<8x8xbf16>, vector<8x8xbf16>, vector<8x8xf32> -> vector<8x8xf32>
    %cst_43 = arith.constant -1.000000e+30 : f32
    %98 = vector.broadcast %cst_43 : f32 to vector<8x8xf32>
    %99 = arith.select %4, %97, %98 : vector<8x8xi1>, vector<8x8xf32>
    %cst_44 = arith.constant dense<0xFF800000> : vector<8xf32>
    %100 = vector.multi_reduction <maximumf>, %99, %cst_44 [1] : vector<8x8xf32> to vector<8xf32>
    %101 = vector.shape_cast %100 : vector<8xf32> to vector<8x1xf32>
    %102 = vector.broadcast %101 : vector<8x1xf32> to vector<8x8xf32>
    %103 = arith.subf %99, %102 : vector<8x8xf32>
    %104 = math.exp %103 : vector<8x8xf32>
    %cst_45 = arith.constant dense<0.000000e+00> : vector<8xf32>
    %105 = vector.multi_reduction <add>, %104, %cst_45 [1] : vector<8x8xf32> to vector<8xf32>
    %106 = vector.shape_cast %105 : vector<8xf32> to vector<8x1xf32>
    %107 = tpu.reciprocal %106 : vector<8x1xf32> -> vector<8x1xf32>
    %108 = vector.broadcast %107 : vector<8x1xf32> to vector<8x8xf32>
    %109 = arith.mulf %104, %108 : vector<8x8xf32>
    %110 = arith.truncf %109 : vector<8x8xf32> to vector<8x8xbf16>
    %cst_46 = arith.constant dense<0.000000e+00> : vector<8x8xf32>
    %111 = tpu.matmul %110, %96, %cst_46 {dimension_numbers = #tpu.dot_dimension_numbers<[1], [0], [0], [1], [0, 0, 1, 1], [], []>} : vector<8x8xbf16>, vector<8x8xbf16>, vector<8x8xf32> -> vector<8x8xf32>
    %112 = tpu.concatenate %90, %111 in 0 : vector<8x8xf32>, vector<8x8xf32> -> vector<16x8xf32>
    %113 = arith.truncf %112 : vector<16x8xf32> to vector<16x8xbf16>
    %c1_47 = arith.constant 1 : index
    %c0_48 = arith.constant 0 : index
    %c0_49 = arith.constant 0 : index
    %114 = vector.load %arg5[%c1_47, %c0_48, %c0_49] : memref<4x8x32xbf16, #tpu.memory_space<vmem>>, vector<1x8x32xbf16>
    %115 = vector.shape_cast %114 : vector<1x8x32xbf16> to vector<8x32xbf16>
    %cst_50 = arith.constant dense<0.000000e+00> : vector<16x32xf32>
    %116 = tpu.matmul %113, %115, %cst_50 {dimension_numbers = #tpu.dot_dimension_numbers<[1], [0], [0], [1], [0, 0, 1, 1], [], []>} : vector<16x8xbf16>, vector<8x32xbf16>, vector<16x32xf32> -> vector<16x32xf32>
    %c2 = arith.constant 2 : index
    %c0_51 = arith.constant 0 : index
    %c0_52 = arith.constant 0 : index
    %117 = vector.load %arg2[%c2, %c0_51, %c0_52] : memref<4x32x8xbf16, #tpu.memory_space<vmem>>, vector<1x32x8xbf16>
    %118 = vector.shape_cast %117 : vector<1x32x8xbf16> to vector<32x8xbf16>
    %cst_53 = arith.constant dense<0.000000e+00> : vector<16x8xf32>
    %119 = tpu.matmul %1, %118, %cst_53 {dimension_numbers = #tpu.dot_dimension_numbers<[1], [0], [0], [1], [0, 0, 1, 1], [], []>} : vector<16x32xbf16>, vector<32x8xbf16>, vector<16x8xf32> -> vector<16x8xf32>
    %c2_54 = arith.constant 2 : index
    %c0_55 = arith.constant 0 : index
    %c0_56 = arith.constant 0 : index
    %120 = vector.load %arg3[%c2_54, %c0_55, %c0_56] : memref<4x32x8xbf16, #tpu.memory_space<vmem>>, vector<1x32x8xbf16>
    %121 = vector.shape_cast %120 : vector<1x32x8xbf16> to vector<32x8xbf16>
    %cst_57 = arith.constant dense<0.000000e+00> : vector<16x8xf32>
    %122 = tpu.matmul %1, %121, %cst_57 {dimension_numbers = #tpu.dot_dimension_numbers<[1], [0], [0], [1], [0, 0, 1, 1], [], []>} : vector<16x32xbf16>, vector<32x8xbf16>, vector<16x8xf32> -> vector<16x8xf32>
    %c2_58 = arith.constant 2 : index
    %c0_59 = arith.constant 0 : index
    %c0_60 = arith.constant 0 : index
    %123 = vector.load %arg4[%c2_58, %c0_59, %c0_60] : memref<4x32x8xbf16, #tpu.memory_space<vmem>>, vector<1x32x8xbf16>
    %124 = vector.shape_cast %123 : vector<1x32x8xbf16> to vector<32x8xbf16>
    %cst_61 = arith.constant dense<0.000000e+00> : vector<16x8xf32>
    %125 = tpu.matmul %1, %124, %cst_61 {dimension_numbers = #tpu.dot_dimension_numbers<[1], [0], [0], [1], [0, 0, 1, 1], [], []>} : vector<16x32xbf16>, vector<32x8xbf16>, vector<16x8xf32> -> vector<16x8xf32>
    %126 = vector.extract_strided_slice %119 {offsets = [0, 0], sizes = [8, 8], strides = [1, 1]} : vector<16x8xf32> to vector<8x8xf32>
    %127 = arith.truncf %126 : vector<8x8xf32> to vector<8x8xbf16>
    %128 = vector.extract_strided_slice %122 {offsets = [0, 0], sizes = [8, 8], strides = [1, 1]} : vector<16x8xf32> to vector<8x8xf32>
    %129 = arith.truncf %128 : vector<8x8xf32> to vector<8x8xbf16>
    %130 = vector.extract_strided_slice %125 {offsets = [0, 0], sizes = [8, 8], strides = [1, 1]} : vector<16x8xf32> to vector<8x8xf32>
    %131 = arith.truncf %130 : vector<8x8xf32> to vector<8x8xbf16>
    %cst_62 = arith.constant dense<0.000000e+00> : vector<8x8xf32>
    %132 = tpu.matmul %127, %129, %cst_62 {dimension_numbers = #tpu.dot_dimension_numbers<[1], [1], [0], [0], [0, 0, 1, 0], [], []>} : vector<8x8xbf16>, vector<8x8xbf16>, vector<8x8xf32> -> vector<8x8xf32>
    %cst_63 = arith.constant -1.000000e+30 : f32
    %133 = vector.broadcast %cst_63 : f32 to vector<8x8xf32>
    %134 = arith.select %4, %132, %133 : vector<8x8xi1>, vector<8x8xf32>
    %cst_64 = arith.constant dense<0xFF800000> : vector<8xf32>
    %135 = vector.multi_reduction <maximumf>, %134, %cst_64 [1] : vector<8x8xf32> to vector<8xf32>
    %136 = vector.shape_cast %135 : vector<8xf32> to vector<8x1xf32>
    %137 = vector.broadcast %136 : vector<8x1xf32> to vector<8x8xf32>
    %138 = arith.subf %134, %137 : vector<8x8xf32>
    %139 = math.exp %138 : vector<8x8xf32>
    %cst_65 = arith.constant dense<0.000000e+00> : vector<8xf32>
    %140 = vector.multi_reduction <add>, %139, %cst_65 [1] : vector<8x8xf32> to vector<8xf32>
    %141 = vector.shape_cast %140 : vector<8xf32> to vector<8x1xf32>
    %142 = tpu.reciprocal %141 : vector<8x1xf32> -> vector<8x1xf32>
    %143 = vector.broadcast %142 : vector<8x1xf32> to vector<8x8xf32>
    %144 = arith.mulf %139, %143 : vector<8x8xf32>
    %145 = arith.truncf %144 : vector<8x8xf32> to vector<8x8xbf16>
    %cst_66 = arith.constant dense<0.000000e+00> : vector<8x8xf32>
    %146 = tpu.matmul %145, %131, %cst_66 {dimension_numbers = #tpu.dot_dimension_numbers<[1], [0], [0], [1], [0, 0, 1, 1], [], []>} : vector<8x8xbf16>, vector<8x8xbf16>, vector<8x8xf32> -> vector<8x8xf32>
    %147 = vector.extract_strided_slice %119 {offsets = [8, 0], sizes = [8, 8], strides = [1, 1]} : vector<16x8xf32> to vector<8x8xf32>
    %148 = arith.truncf %147 : vector<8x8xf32> to vector<8x8xbf16>
    %149 = vector.extract_strided_slice %122 {offsets = [8, 0], sizes = [8, 8], strides = [1, 1]} : vector<16x8xf32> to vector<8x8xf32>
    %150 = arith.truncf %149 : vector<8x8xf32> to vector<8x8xbf16>
    %151 = vector.extract_strided_slice %125 {offsets = [8, 0], sizes = [8, 8], strides = [1, 1]} : vector<16x8xf32> to vector<8x8xf32>
    %152 = arith.truncf %151 : vector<8x8xf32> to vector<8x8xbf16>
    %cst_67 = arith.constant dense<0.000000e+00> : vector<8x8xf32>
    %153 = tpu.matmul %148, %150, %cst_67 {dimension_numbers = #tpu.dot_dimension_numbers<[1], [1], [0], [0], [0, 0, 1, 0], [], []>} : vector<8x8xbf16>, vector<8x8xbf16>, vector<8x8xf32> -> vector<8x8xf32>
    %cst_68 = arith.constant -1.000000e+30 : f32
    %154 = vector.broadcast %cst_68 : f32 to vector<8x8xf32>
    %155 = arith.select %4, %153, %154 : vector<8x8xi1>, vector<8x8xf32>
    %cst_69 = arith.constant dense<0xFF800000> : vector<8xf32>
    %156 = vector.multi_reduction <maximumf>, %155, %cst_69 [1] : vector<8x8xf32> to vector<8xf32>
    %157 = vector.shape_cast %156 : vector<8xf32> to vector<8x1xf32>
    %158 = vector.broadcast %157 : vector<8x1xf32> to vector<8x8xf32>
    %159 = arith.subf %155, %158 : vector<8x8xf32>
    %160 = math.exp %159 : vector<8x8xf32>
    %cst_70 = arith.constant dense<0.000000e+00> : vector<8xf32>
    %161 = vector.multi_reduction <add>, %160, %cst_70 [1] : vector<8x8xf32> to vector<8xf32>
    %162 = vector.shape_cast %161 : vector<8xf32> to vector<8x1xf32>
    %163 = tpu.reciprocal %162 : vector<8x1xf32> -> vector<8x1xf32>
    %164 = vector.broadcast %163 : vector<8x1xf32> to vector<8x8xf32>
    %165 = arith.mulf %160, %164 : vector<8x8xf32>
    %166 = arith.truncf %165 : vector<8x8xf32> to vector<8x8xbf16>
    %cst_71 = arith.constant dense<0.000000e+00> : vector<8x8xf32>
    %167 = tpu.matmul %166, %152, %cst_71 {dimension_numbers = #tpu.dot_dimension_numbers<[1], [0], [0], [1], [0, 0, 1, 1], [], []>} : vector<8x8xbf16>, vector<8x8xbf16>, vector<8x8xf32> -> vector<8x8xf32>
    %168 = tpu.concatenate %146, %167 in 0 : vector<8x8xf32>, vector<8x8xf32> -> vector<16x8xf32>
    %169 = arith.truncf %168 : vector<16x8xf32> to vector<16x8xbf16>
    %c2_72 = arith.constant 2 : index
    %c0_73 = arith.constant 0 : index
    %c0_74 = arith.constant 0 : index
    %170 = vector.load %arg5[%c2_72, %c0_73, %c0_74] : memref<4x8x32xbf16, #tpu.memory_space<vmem>>, vector<1x8x32xbf16>
    %171 = vector.shape_cast %170 : vector<1x8x32xbf16> to vector<8x32xbf16>
    %cst_75 = arith.constant dense<0.000000e+00> : vector<16x32xf32>
    %172 = tpu.matmul %169, %171, %cst_75 {dimension_numbers = #tpu.dot_dimension_numbers<[1], [0], [0], [1], [0, 0, 1, 1], [], []>} : vector<16x8xbf16>, vector<8x32xbf16>, vector<16x32xf32> -> vector<16x32xf32>
    %c3 = arith.constant 3 : index
    %c0_76 = arith.constant 0 : index
    %c0_77 = arith.constant 0 : index
    %173 = vector.load %arg2[%c3, %c0_76, %c0_77] : memref<4x32x8xbf16, #tpu.memory_space<vmem>>, vector<1x32x8xbf16>
    %174 = vector.shape_cast %173 : vector<1x32x8xbf16> to vector<32x8xbf16>
    %cst_78 = arith.constant dense<0.000000e+00> : vector<16x8xf32>
    %175 = tpu.matmul %1, %174, %cst_78 {dimension_numbers = #tpu.dot_dimension_numbers<[1], [0], [0], [1], [0, 0, 1, 1], [], []>} : vector<16x32xbf16>, vector<32x8xbf16>, vector<16x8xf32> -> vector<16x8xf32>
    %c3_79 = arith.constant 3 : index
    %c0_80 = arith.constant 0 : index
    %c0_81 = arith.constant 0 : index
    %176 = vector.load %arg3[%c3_79, %c0_80, %c0_81] : memref<4x32x8xbf16, #tpu.memory_space<vmem>>, vector<1x32x8xbf16>
    %177 = vector.shape_cast %176 : vector<1x32x8xbf16> to vector<32x8xbf16>
    %cst_82 = arith.constant dense<0.000000e+00> : vector<16x8xf32>
    %178 = tpu.matmul %1, %177, %cst_82 {dimension_numbers = #tpu.dot_dimension_numbers<[1], [0], [0], [1], [0, 0, 1, 1], [], []>} : vector<16x32xbf16>, vector<32x8xbf16>, vector<16x8xf32> -> vector<16x8xf32>
    %c3_83 = arith.constant 3 : index
    %c0_84 = arith.constant 0 : index
    %c0_85 = arith.constant 0 : index
    %179 = vector.load %arg4[%c3_83, %c0_84, %c0_85] : memref<4x32x8xbf16, #tpu.memory_space<vmem>>, vector<1x32x8xbf16>
    %180 = vector.shape_cast %179 : vector<1x32x8xbf16> to vector<32x8xbf16>
    %cst_86 = arith.constant dense<0.000000e+00> : vector<16x8xf32>
    %181 = tpu.matmul %1, %180, %cst_86 {dimension_numbers = #tpu.dot_dimension_numbers<[1], [0], [0], [1], [0, 0, 1, 1], [], []>} : vector<16x32xbf16>, vector<32x8xbf16>, vector<16x8xf32> -> vector<16x8xf32>
    %182 = vector.extract_strided_slice %175 {offsets = [0, 0], sizes = [8, 8], strides = [1, 1]} : vector<16x8xf32> to vector<8x8xf32>
    %183 = arith.truncf %182 : vector<8x8xf32> to vector<8x8xbf16>
    %184 = vector.extract_strided_slice %178 {offsets = [0, 0], sizes = [8, 8], strides = [1, 1]} : vector<16x8xf32> to vector<8x8xf32>
    %185 = arith.truncf %184 : vector<8x8xf32> to vector<8x8xbf16>
    %186 = vector.extract_strided_slice %181 {offsets = [0, 0], sizes = [8, 8], strides = [1, 1]} : vector<16x8xf32> to vector<8x8xf32>
    %187 = arith.truncf %186 : vector<8x8xf32> to vector<8x8xbf16>
    %cst_87 = arith.constant dense<0.000000e+00> : vector<8x8xf32>
    %188 = tpu.matmul %183, %185, %cst_87 {dimension_numbers = #tpu.dot_dimension_numbers<[1], [1], [0], [0], [0, 0, 1, 0], [], []>} : vector<8x8xbf16>, vector<8x8xbf16>, vector<8x8xf32> -> vector<8x8xf32>
    %cst_88 = arith.constant -1.000000e+30 : f32
    %189 = vector.broadcast %cst_88 : f32 to vector<8x8xf32>
    %190 = arith.select %4, %188, %189 : vector<8x8xi1>, vector<8x8xf32>
    %cst_89 = arith.constant dense<0xFF800000> : vector<8xf32>
    %191 = vector.multi_reduction <maximumf>, %190, %cst_89 [1] : vector<8x8xf32> to vector<8xf32>
    %192 = vector.shape_cast %191 : vector<8xf32> to vector<8x1xf32>
    %193 = vector.broadcast %192 : vector<8x1xf32> to vector<8x8xf32>
    %194 = arith.subf %190, %193 : vector<8x8xf32>
    %195 = math.exp %194 : vector<8x8xf32>
    %cst_90 = arith.constant dense<0.000000e+00> : vector<8xf32>
    %196 = vector.multi_reduction <add>, %195, %cst_90 [1] : vector<8x8xf32> to vector<8xf32>
    %197 = vector.shape_cast %196 : vector<8xf32> to vector<8x1xf32>
    %198 = tpu.reciprocal %197 : vector<8x1xf32> -> vector<8x1xf32>
    %199 = vector.broadcast %198 : vector<8x1xf32> to vector<8x8xf32>
    %200 = arith.mulf %195, %199 : vector<8x8xf32>
    %201 = arith.truncf %200 : vector<8x8xf32> to vector<8x8xbf16>
    %cst_91 = arith.constant dense<0.000000e+00> : vector<8x8xf32>
    %202 = tpu.matmul %201, %187, %cst_91 {dimension_numbers = #tpu.dot_dimension_numbers<[1], [0], [0], [1], [0, 0, 1, 1], [], []>} : vector<8x8xbf16>, vector<8x8xbf16>, vector<8x8xf32> -> vector<8x8xf32>
    %203 = vector.extract_strided_slice %175 {offsets = [8, 0], sizes = [8, 8], strides = [1, 1]} : vector<16x8xf32> to vector<8x8xf32>
    %204 = arith.truncf %203 : vector<8x8xf32> to vector<8x8xbf16>
    %205 = vector.extract_strided_slice %178 {offsets = [8, 0], sizes = [8, 8], strides = [1, 1]} : vector<16x8xf32> to vector<8x8xf32>
    %206 = arith.truncf %205 : vector<8x8xf32> to vector<8x8xbf16>
    %207 = vector.extract_strided_slice %181 {offsets = [8, 0], sizes = [8, 8], strides = [1, 1]} : vector<16x8xf32> to vector<8x8xf32>
    %208 = arith.truncf %207 : vector<8x8xf32> to vector<8x8xbf16>
    %cst_92 = arith.constant dense<0.000000e+00> : vector<8x8xf32>
    %209 = tpu.matmul %204, %206, %cst_92 {dimension_numbers = #tpu.dot_dimension_numbers<[1], [1], [0], [0], [0, 0, 1, 0], [], []>} : vector<8x8xbf16>, vector<8x8xbf16>, vector<8x8xf32> -> vector<8x8xf32>
    %cst_93 = arith.constant -1.000000e+30 : f32
    %210 = vector.broadcast %cst_93 : f32 to vector<8x8xf32>
    %211 = arith.select %4, %209, %210 : vector<8x8xi1>, vector<8x8xf32>
    %cst_94 = arith.constant dense<0xFF800000> : vector<8xf32>
    %212 = vector.multi_reduction <maximumf>, %211, %cst_94 [1] : vector<8x8xf32> to vector<8xf32>
    %213 = vector.shape_cast %212 : vector<8xf32> to vector<8x1xf32>
    %214 = vector.broadcast %213 : vector<8x1xf32> to vector<8x8xf32>
    %215 = arith.subf %211, %214 : vector<8x8xf32>
    %216 = math.exp %215 : vector<8x8xf32>
    %cst_95 = arith.constant dense<0.000000e+00> : vector<8xf32>
    %217 = vector.multi_reduction <add>, %216, %cst_95 [1] : vector<8x8xf32> to vector<8xf32>
    %218 = vector.shape_cast %217 : vector<8xf32> to vector<8x1xf32>
    %219 = tpu.reciprocal %218 : vector<8x1xf32> -> vector<8x1xf32>
    %220 = vector.broadcast %219 : vector<8x1xf32> to vector<8x8xf32>
    %221 = arith.mulf %216, %220 : vector<8x8xf32>
    %222 = arith.truncf %221 : vector<8x8xf32> to vector<8x8xbf16>
    %cst_96 = arith.constant dense<0.000000e+00> : vector<8x8xf32>
    %223 = tpu.matmul %222, %208, %cst_96 {dimension_numbers = #tpu.dot_dimension_numbers<[1], [0], [0], [1], [0, 0, 1, 1], [], []>} : vector<8x8xbf16>, vector<8x8xbf16>, vector<8x8xf32> -> vector<8x8xf32>
    %224 = tpu.concatenate %202, %223 in 0 : vector<8x8xf32>, vector<8x8xf32> -> vector<16x8xf32>
    %225 = arith.truncf %224 : vector<16x8xf32> to vector<16x8xbf16>
    %c3_97 = arith.constant 3 : index
    %c0_98 = arith.constant 0 : index
    %c0_99 = arith.constant 0 : index
    %226 = vector.load %arg5[%c3_97, %c0_98, %c0_99] : memref<4x8x32xbf16, #tpu.memory_space<vmem>>, vector<1x8x32xbf16>
    %227 = vector.shape_cast %226 : vector<1x8x32xbf16> to vector<8x32xbf16>
    %cst_100 = arith.constant dense<0.000000e+00> : vector<16x32xf32>
    %228 = tpu.matmul %225, %227, %cst_100 {dimension_numbers = #tpu.dot_dimension_numbers<[1], [0], [0], [1], [0, 0, 1, 1], [], []>} : vector<16x8xbf16>, vector<8x32xbf16>, vector<16x32xf32> -> vector<16x32xf32>
    %229 = arith.addf %60, %116 : vector<16x32xf32>
    %230 = arith.addf %229, %172 : vector<16x32xf32>
    %231 = arith.addf %230, %228 : vector<16x32xf32>
    %c0_101 = arith.constant 0 : index
    %c0_102 = arith.constant 0 : index
    %232 = vector.load %arg6[%c0_101, %c0_102] : memref<1x32xf32, #tpu.memory_space<vmem>>, vector<1x32xf32>
    %233 = vector.broadcast %232 : vector<1x32xf32> to vector<16x32xf32>
    %234 = arith.addf %231, %233 : vector<16x32xf32>
    %c0_103 = arith.constant 0 : index
    %c0_104 = arith.constant 0 : index
    %235 = vector.load %arg7[%c0_103, %c0_104] : memref<16x32xf32, #tpu.memory_space<vmem>>, vector<16x32xf32>
    tpu.vector_store %arg7[%c0_103, %c0_104], %234 {strides = array<i32>} : memref<16x32xf32, #tpu.memory_space<vmem>>, vector<16x32xf32>,
    return
  }
  func.func @transform_0(%arg0: i32) -> (i32, i32) {
    %c0_i32 = arith.constant 0 : i32
    %c0_i32_0 = arith.constant 0 : i32
    %c0_i32_1 = arith.constant 0 : i32
    return %c0_i32, %c0_i32_0 : i32, i32
  }
  func.func @transform_1(%arg0: i32) -> (i32, i32, i32) {
    %c0_i32 = arith.constant 0 : i32
    %c0_i32_0 = arith.constant 0 : i32
    %c0_i32_1 = arith.constant 0 : i32
    %c0_i32_2 = arith.constant 0 : i32
    return %c0_i32, %c0_i32_0, %c0_i32_1 : i32, i32, i32
  }
  func.func @transform_2(%arg0: i32) -> (i32, i32, i32) {
    %c0_i32 = arith.constant 0 : i32
    %c0_i32_0 = arith.constant 0 : i32
    %c0_i32_1 = arith.constant 0 : i32
    %c0_i32_2 = arith.constant 0 : i32
    return %c0_i32, %c0_i32_0, %c0_i32_1 : i32, i32, i32
  }
  func.func @transform_3(%arg0: i32) -> (i32, i32, i32) {
    %c0_i32 = arith.constant 0 : i32
    %c0_i32_0 = arith.constant 0 : i32
    %c0_i32_1 = arith.constant 0 : i32
    %c0_i32_2 = arith.constant 0 : i32
    return %c0_i32, %c0_i32_0, %c0_i32_1 : i32, i32, i32
  }
  func.func @transform_4(%arg0: i32) -> (i32, i32, i32) {
    %c0_i32 = arith.constant 0 : i32
    %c0_i32_0 = arith.constant 0 : i32
    %c0_i32_1 = arith.constant 0 : i32
    %c0_i32_2 = arith.constant 0 : i32
    return %c0_i32, %c0_i32_0, %c0_i32_1 : i32, i32, i32
  }
  func.func @transform_5(%arg0: i32) -> (i32, i32) {
    %c0_i32 = arith.constant 0 : i32
    %c0_i32_0 = arith.constant 0 : i32
    %c0_i32_1 = arith.constant 0 : i32
    return %c0_i32, %c0_i32_0 : i32, i32
  }
  func.func @transform_6(%arg0: i32) -> (i32, i32) {
    %c0_i32 = arith.constant 0 : i32
    %c0_i32_0 = arith.constant 0 : i32
    %c0_i32_1 = arith.constant 0 : i32
    return %c0_i32, %c0_i32_0 : i32, i32
  }
}

</mosaic_0001>

<llo_original>
// kernel: tpu_custom_call.1
$region0: #{tpu_custom_call.1}
  #allocation0 [shape = 'u32[]', space=smem, size = 0x4, offset = 0x4, fixed_abs, tag = 'smem constant byte address 0x4 - core index']
  #allocation1 [shape = 'u32[144,128]{1,0:T(1,128)}', space=vmem, size = 0x12000, scoped, tag = 'internal scratch']
  %s0 = inlined_call_operand.vmem [shape: f32[16,32], index: 0, kind: input, shape index: {}]
  %s1 = inlined_call_operand.vmem [shape: bf16[4,32,8], index: 1, kind: input, shape index: {}]
  %s2 = inlined_call_operand.vmem [shape: bf16[4,32,8], index: 2, kind: input, shape index: {}]
  %s3 = inlined_call_operand.vmem [shape: bf16[4,32,8], index: 3, kind: input, shape index: {}]
  %s4 = inlined_call_operand.vmem [shape: bf16[4,8,32], index: 4, kind: input, shape index: {}]
  %s5 = inlined_call_operand.vmem [shape: f32[1,32], index: 5, kind: input, shape index: {}]
  %s6 = inlined_call_operand.hbm [shape: f32[16,32], index: 6, kind: output, shape index: {}]
  %s7 = sld [smem:[#allocation0]]
  $region34: #{tpu_custom_call.1} parent=0
    _
  %s9 = ssub.s32 1, %s7
  %s10 = scalar_select 0, %s9, %s7
  $region1: #{tpu_custom_call.1} parent=0
    #allocation2 [shape = 'u8[8192]{0}', space=vmem, size = 0x2000, scoped, tag = 'output window, operand 0, single buffered']
    #allocation3 [shape = 's32[1]{0}', space=sflag, size = 0x4, scoped, tag = 'scoped memory for tpu_custom_call.1']
    %11 = vsyncpa [#allocation3], 0
    // Predicated region
    $region2: #{tpu_custom_call.1} parent=1 // pred_check
      _
    $region3: #{tpu_custom_call.1} parent=1 // pred_check_branch
      %13 = sbr.rel (0) target = $region5
    $region4: #{tpu_custom_call.1} parent=1 // pred_region
      _
    $region5: #{tpu_custom_call.1} parent=1 // pred_fallthru
      _
    // Predicated region
    $region6: #{tpu_custom_call.1} parent=1 // pred_check
      _
    $region7: #{tpu_custom_call.1} parent=1 // pred_check_branch
      %15 = sbr.rel (0) target = $region9
    $region8: #{tpu_custom_call.1} parent=1 // pred_region
      _
    $region9: #{tpu_custom_call.1} parent=1 // pred_fallthru
      _
    // Predicated region
    $region10: #{tpu_custom_call.1} parent=1 // pred_check
      _
    $region11: #{tpu_custom_call.1} parent=1 // pred_check_branch
      %17 = sbr.rel (0) target = $region13
    $region12: #{tpu_custom_call.1} parent=1 // pred_region
      _
    $region13: #{tpu_custom_call.1} parent=1 // pred_fallthru
      _
    // Predicated region
    $region14: #{tpu_custom_call.1} parent=1 // pred_check
      _
    $region15: #{tpu_custom_call.1} parent=1 // pred_check_branch
      %19 = sbr.rel (0) target = $region17
    $region16: #{tpu_custom_call.1} parent=1 // pred_region
      _
    $region17: #{tpu_custom_call.1} parent=1 // pred_fallthru
      _
    // Predicated region
    $region18: #{tpu_custom_call.1} parent=1 // pred_check
      _
    $region19: #{tpu_custom_call.1} parent=1 // pred_check_branch
      %21 = sbr.rel (0) target = $region21
    $region20: #{tpu_custom_call.1} parent=1 // pred_region
      _
    $region21: #{tpu_custom_call.1} parent=1 // pred_fallthru
      _
    // Predicated region
    $region22: #{tpu_custom_call.1} parent=1 // pred_check
      _
    $region23: #{tpu_custom_call.1} parent=1 // pred_check_branch
      %23 = sbr.rel (0) target = $region25
    $region24: #{tpu_custom_call.1} parent=1 // pred_region
      _
    $region25: #{tpu_custom_call.1} parent=1 // pred_fallthru
      _
    %v25 = vld [vmem:[%s0] sm:$0xff]
    %v26 = vld [vmem:[%s0 + $0x8] sm:$0xff]
    %v27 = vpack.c.bf16 %v26, %v25
    %v28 = vlaneseq
    %v29 = vshrl.u32 %v28, 7
    %v30 = vlaneseq
    %v31 = vand.u32 %v30, 127
    %vm32 = vcmp.le.s32.totalorder %v31, %v29
    %v33 = vld [vmem:[%s1] sm:$0xf]
    %v34 = vld [vmem:[%s1 + $0x4] sm:$0xf]
    %v35 = vld [vmem:[%s1 + $0x8] sm:$0xf]
    %v36 = vld [vmem:[%s1 + $0xc] sm:$0xf]
    %v41 = vunpack.c.l.b16 %v33
    %v42 = vunpack.c.l.b16 %v34
    %v43 = vunpack.c.l.b16 %v35
    %v44 = vunpack.c.l.b16 %v36
    %v45 = vpack.c.b16 %v42, %v41
    %v46 = vpack.c.b16 %v44, %v43
    %vm49 = vcmask 261120
    %v51 = vsel %vm49, %v27, 0
    %53 = vmatprep.subr.bf16.mxu0 0
    %54 = vmatpush1.bf16.msra.mxu0 %v45
    %55 = vmatprep.subr.bf16.mxu0 0
    %56 = vmatpush1.bf16.msra.mxu0 %v46
    %57 = vmatprep.subr.bf16.mxu0 0
    %58 = vmatpush1.bf16.msra.mxu0 0
    %59 = vmatprep.subr.bf16.mxu0 0
    %60 = vmatpush1.bf16.msra.mxu0 0
    %61 = vmatprep.subr.bf16.mxu0 0
    %62 = vmatpush1.bf16.msra.mxu0 0
    %63 = vmatprep.subr.bf16.mxu0 0
    %64 = vmatpush1.bf16.msra.mxu0 0
    %65 = vmatprep.subr.bf16.mxu0 0
    %66 = vmatpush1.bf16.msra.mxu0 0
    %67 = vmatprep.subr.bf16.mxu0 0
    %68 = vmatpush1.bf16.msra.mxu0 0
    %69 = vmatprep.subr.bf16.mxu0 0
    %70 = vmatpush1.bf16.msra.mxu0 0
    %71 = vmatprep.subr.bf16.mxu0 0
    %72 = vmatpush1.bf16.msra.mxu0 0
    %73 = vmatprep.subr.bf16.mxu0 0
    %74 = vmatpush1.bf16.msra.mxu0 0
    %75 = vmatprep.subr.bf16.mxu0 0
    %76 = vmatpush1.bf16.msra.mxu0 0
    %77 = vmatprep.subr.bf16.mxu0 0
    %78 = vmatpush1.bf16.msra.mxu0 0
    %79 = vmatprep.subr.bf16.mxu0 0
    %80 = vmatpush1.bf16.msra.mxu0 0
    %81 = vmatprep.subr.bf16.mxu0 0
    %82 = vmatpush1.bf16.msra.mxu0 0
    %83 = vmatprep.subr.bf16.mxu0 0
    %84 = vmatpush1.bf16.msra.mxu0 0
    %85 = vmatprep.mubr.bf16.mxu0 0
    %86 = vmatmul.mubr.bf16.gmra.mrb[0].mxu0 %v51
    %v87 = vpop.f32.mrb[0].mxu0
    %v88 = vadd.f32 0.0, %v87
    %v89 = vpop.f32.mrb[0].mxu0
    %v90 = vpop.f32.mrb[0].mxu0
    %v91 = vadd.f32 0.0, %v90
    %v92 = vpop.f32.mrb[0].mxu0
    %93 = vdwg.mxu0
    %v94 = vld [vmem:[%s2] sm:$0xf]
    %v95 = vld [vmem:[%s2 + $0x4] sm:$0xf]
    %v96 = vld [vmem:[%s2 + $0x8] sm:$0xf]
    %v97 = vld [vmem:[%s2 + $0xc] sm:$0xf]
    %v102 = vunpack.c.l.b16 %v94
    %v103 = vunpack.c.l.b16 %v95
    %v104 = vunpack.c.l.b16 %v96
    %v105 = vunpack.c.l.b16 %v97
    %v106 = vpack.c.b16 %v103, %v102
    %v107 = vpack.c.b16 %v105, %v104
    %110 = vmatprep.subr.bf16.mxu0 0
    %111 = vmatpush1.bf16.msra.mxu0 %v106
    %112 = vmatprep.subr.bf16.mxu0 0
    %113 = vmatpush1.bf16.msra.mxu0 %v107
    %114 = vmatprep.subr.bf16.mxu0 0
    %115 = vmatpush1.bf16.msra.mxu0 0
    %116 = vmatprep.subr.bf16.mxu0 0
    %117 = vmatpush1.bf16.msra.mxu0 0
    %118 = vmatprep.subr.bf16.mxu0 0
    %119 = vmatpush1.bf16.msra.mxu0 0
    %120 = vmatprep.subr.bf16.mxu0 0
    %121 = vmatpush1.bf16.msra.mxu0 0
    %122 = vmatprep.subr.bf16.mxu0 0
    %123 = vmatpush1.bf16.msra.mxu0 0
    %124 = vmatprep.subr.bf16.mxu0 0
    %125 = vmatpush1.bf16.msra.mxu0 0
    %126 = vmatprep.subr.bf16.mxu0 0
    %127 = vmatpush1.bf16.msra.mxu0 0
    %128 = vmatprep.subr.bf16.mxu0 0
    %129 = vmatpush1.bf16.msra.mxu0 0
    %130 = vmatprep.subr.bf16.mxu0 0
    %131 = vmatpush1.bf16.msra.mxu0 0
    %132 = vmatprep.subr.bf16.mxu0 0
    %133 = vmatpush1.bf16.msra.mxu0 0
    %134 = vmatprep.subr.bf16.mxu0 0
    %135 = vmatpush1.bf16.msra.mxu0 0
    %136 = vmatprep.subr.bf16.mxu0 0
    %137 = vmatpush1.bf16.msra.mxu0 0
    %138 = vmatprep.subr.bf16.mxu0 0
    %139 = vmatpush1.bf16.msra.mxu0 0
    %140 = vmatprep.subr.bf16.mxu0 0
    %141 = vmatpush1.bf16.msra.mxu0 0
    %142 = vmatprep.mubr.bf16.mxu0 0
    %143 = vmatmul.mubr.bf16.gmra.mrb[0].mxu0 %v51
    %v144 = vpop.f32.mrb[0].mxu0
    %v145 = vadd.f32 0.0, %v144
    %v146 = vpop.f32.mrb[0].mxu0
    %v147 = vpop.f32.mrb[0].mxu0
    %v148 = vadd.f32 0.0, %v147
    %v149 = vpop.f32.mrb[0].mxu0
    %150 = vdwg.mxu0
    %v151 = vld [vmem:[%s3] sm:$0xf]
    %v152 = vld [vmem:[%s3 + $0x4] sm:$0xf]
    %v153 = vld [vmem:[%s3 + $0x8] sm:$0xf]
    %v154 = vld [vmem:[%s3 + $0xc] sm:$0xf]
    %v159 = vunpack.c.l.b16 %v151
    %v160 = vunpack.c.l.b16 %v152
    %v161 = vunpack.c.l.b16 %v153
    %v162 = vunpack.c.l.b16 %v154
    %v163 = vpack.c.b16 %v160, %v159
    %v164 = vpack.c.b16 %v162, %v161
    %167 = vmatprep.subr.bf16.mxu0 0
    %168 = vmatpush1.bf16.msra.mxu0 %v163
    %169 = vmatprep.subr.bf16.mxu0 0
    %170 = vmatpush1.bf16.msra.mxu0 %v164
    %171 = vmatprep.subr.bf16.mxu0 0
    %172 = vmatpush1.bf16.msra.mxu0 0
    %173 = vmatprep.subr.bf16.mxu0 0
    %174 = vmatpush1.bf16.msra.mxu0 0
    %175 = vmatprep.subr.bf16.mxu0 0
    %176 = vmatpush1.bf16.msra.mxu0 0
    %177 = vmatprep.subr.bf16.mxu0 0
    %178 = vmatpush1.bf16.msra.mxu0 0
    %179 = vmatprep.subr.bf16.mxu0 0
    %180 = vmatpush1.bf16.msra.mxu0 0
    %181 = vmatprep.subr.bf16.mxu0 0
    %182 = vmatpush1.bf16.msra.mxu0 0
    %183 = vmatprep.subr.bf16.mxu0 0
    %184 = vmatpush1.bf16.msra.mxu0 0
    %185 = vmatprep.subr.bf16.mxu0 0
    %186 = vmatpush1.bf16.msra.mxu0 0
    %187 = vmatprep.subr.bf16.mxu0 0
    %188 = vmatpush1.bf16.msra.mxu0 0
    %189 = vmatprep.subr.bf16.mxu0 0
    %190 = vmatpush1.bf16.msra.mxu0 0
    %191 = vmatprep.subr.bf16.mxu0 0
    %192 = vmatpush1.bf16.msra.mxu0 0
    %193 = vmatprep.subr.bf16.mxu0 0
    %194 = vmatpush1.bf16.msra.mxu0 0
    %195 = vmatprep.subr.bf16.mxu0 0
    %196 = vmatpush1.bf16.msra.mxu0 0
    %197 = vmatprep.subr.bf16.mxu0 0
    %198 = vmatpush1.bf16.msra.mxu0 0
    %199 = vmatprep.mubr.bf16.mxu0 0
    %200 = vmatmul.mubr.bf16.gmra.mrb[0].mxu0 %v51
    %v201 = vpop.f32.mrb[0].mxu0
    %v202 = vadd.f32 0.0, %v201
    %v203 = vpop.f32.mrb[0].mxu0
    %v204 = vpop.f32.mrb[0].mxu0
    %v205 = vadd.f32 0.0, %v204
    %v206 = vpop.f32.mrb[0].mxu0
    %207 = vdwg.mxu0
    %v208 = vpack.c.bf16 %v88, %v88
    %v209 = vpack.c.bf16 %v145, %v145
    %v210 = vpack.c.bf16 %v202, %v202
    %vm211 = vcmask 64512
    %v213 = vsel %vm211, %v208, 0
    %v216 = vsel %vm211, %v209, 0
    %218 = vmatprep.subr.bf16.mxu0 0
    %219 = vmatpush1.bf16.xpose.msra.mxu0 %v216
    %220 = vmatprep.subr.bf16.mxu0 0
    %221 = vmatpush1.bf16.xpose.msra.mxu0 0
    %222 = vmatprep.subr.bf16.mxu0 0
    %223 = vmatpush1.bf16.xpose.msra.mxu0 0
    %224 = vmatprep.subr.bf16.mxu0 0
    %225 = vmatpush1.bf16.xpose.msra.mxu0 0
    %226 = vmatprep.subr.bf16.mxu0 0
    %227 = vmatpush1.bf16.xpose.msra.mxu0 0
    %228 = vmatprep.subr.bf16.mxu0 0
    %229 = vmatpush1.bf16.xpose.msra.mxu0 0
    %230 = vmatprep.subr.bf16.mxu0 0
    %231 = vmatpush1.bf16.xpose.msra.mxu0 0
    %232 = vmatprep.subr.bf16.mxu0 0
    %233 = vmatpush1.bf16.xpose.msra.mxu0 0
    %234 = vmatprep.subr.bf16.mxu0 0
    %235 = vmatpush1.bf16.xpose.msra.mxu0 0
    %236 = vmatprep.subr.bf16.mxu0 0
    %237 = vmatpush1.bf16.xpose.msra.mxu0 0
    %238 = vmatprep.subr.bf16.mxu0 0
    %239 = vmatpush1.bf16.xpose.msra.mxu0 0
    %240 = vmatprep.subr.bf16.mxu0 0
    %241 = vmatpush1.bf16.xpose.msra.mxu0 0
    %242 = vmatprep.subr.bf16.mxu0 0
    %243 = vmatpush1.bf16.xpose.msra.mxu0 0
    %244 = vmatprep.subr.bf16.mxu0 0
    %245 = vmatpush1.bf16.xpose.msra.mxu0 0
    %246 = vmatprep.subr.bf16.mxu0 0
    %247 = vmatpush1.bf16.xpose.msra.mxu0 0
    %248 = vmatprep.subr.bf16.mxu0 0
    %249 = vmatpush1.bf16.xpose.msra.mxu0 0
    %250 = vmatprep.mubr.bf16.mxu0 0
    %251 = vmatmul.mubr.bf16.gmra.mrb[0].mxu0 %v213
    %v252 = vpop.f32.mrb[0].mxu0
    %v253 = vadd.f32 0.0, %v252
    %v254 = vpop.f32.mrb[0].mxu0
    %v255 = vpop.f32.mrb[0].mxu0
    %v256 = vpop.f32.mrb[0].mxu0
    %257 = vdwg.mxu0
    %v258 = vsel %vm32, %v253, -1e+30
    %v259 = vsel %vm211, %v258, -inf
    %260 = vmax.xlane.f32.xlu0 %v259
    %v261 = vpop.xlane.xlu0 %260
    %v262 = vsub.f32 %v258, %v261
    %v263 = vmul.f32 %v262, 1.442695
    %v264 = vpow.pop %v263
    %v265 = vsel %vm211, %v264, 0.0
    %266 = vadd.xlane.f32.xlu0 %v265
    %v267 = vpop.xlane.xlu0 %266
    %v268 = vrcp.pop %v267
    %v269 = vmul.f32 %v264, %v268
    %v270 = vpack.c.bf16 %v269, %v269
    %v272 = vsel %vm211, %v270, 0
    %vm274 = vcmask 1043456
    %v276 = vsel %vm274, %v210, 0
    %278 = vmatprep.subr.bf16.mxu0 0
    %279 = vmatpush1.bf16.msra.mxu0 %v276
    %280 = vmatprep.subr.bf16.mxu0 0
    %281 = vmatpush1.bf16.msra.mxu0 0
    %282 = vmatprep.subr.bf16.mxu0 0
    %283 = vmatpush1.bf16.msra.mxu0 0
    %284 = vmatprep.subr.bf16.mxu0 0
    %285 = vmatpush1.bf16.msra.mxu0 0
    %286 = vmatprep.subr.bf16.mxu0 0
    %287 = vmatpush1.bf16.msra.mxu0 0
    %288 = vmatprep.subr.bf16.mxu0 0
    %289 = vmatpush1.bf16.msra.mxu0 0
    %290 = vmatprep.subr.bf16.mxu0 0
    %291 = vmatpush1.bf16.msra.mxu0 0
    %292 = vmatprep.subr.bf16.mxu0 0
    %293 = vmatpush1.bf16.msra.mxu0 0
    %294 = vmatprep.subr.bf16.mxu0 0
    %295 = vmatpush1.bf16.msra.mxu0 0
    %296 = vmatprep.subr.bf16.mxu0 0
    %297 = vmatpush1.bf16.msra.mxu0 0
    %298 = vmatprep.subr.bf16.mxu0 0
    %299 = vmatpush1.bf16.msra.mxu0 0
    %300 = vmatprep.subr.bf16.mxu0 0
    %301 = vmatpush1.bf16.msra.mxu0 0
    %302 = vmatprep.subr.bf16.mxu0 0
    %303 = vmatpush1.bf16.msra.mxu0 0
    %304 = vmatprep.subr.bf16.mxu0 0
    %305 = vmatpush1.bf16.msra.mxu0 0
    %306 = vmatprep.subr.bf16.mxu0 0
    %307 = vmatpush1.bf16.msra.mxu0 0
    %308 = vmatprep.subr.bf16.mxu0 0
    %309 = vmatpush1.bf16.msra.mxu0 0
    %310 = vmatprep.mubr.bf16.mxu0 0
    %311 = vmatmul.mubr.bf16.gmra.mrb[0].mxu0 %v272
    %v312 = vpop.f32.mrb[0].mxu0
    %v313 = vadd.f32 0.0, %v312
    %v314 = vpop.f32.mrb[0].mxu0
    %v315 = vpop.f32.mrb[0].mxu0
    %v316 = vpop.f32.mrb[0].mxu0
    %317 = vdwg.mxu0
    %v318 = vpack.c.bf16 %v91, %v91
    %v319 = vpack.c.bf16 %v148, %v148
    %v320 = vpack.c.bf16 %v205, %v205
    %v322 = vsel %vm211, %v318, 0
    %v325 = vsel %vm211, %v319, 0
    %327 = vmatprep.subr.bf16.mxu0 0
    %328 = vmatpush1.bf16.xpose.msra.mxu0 %v325
    %329 = vmatprep.subr.bf16.mxu0 0
    %330 = vmatpush1.bf16.xpose.msra.mxu0 0
    %331 = vmatprep.subr.bf16.mxu0 0
    %332 = vmatpush1.bf16.xpose.msra.mxu0 0
    %333 = vmatprep.subr.bf16.mxu0 0
    %334 = vmatpush1.bf16.xpose.msra.mxu0 0
    %335 = vmatprep.subr.bf16.mxu0 0
    %336 = vmatpush1.bf16.xpose.msra.mxu0 0
    %337 = vmatprep.subr.bf16.mxu0 0
    %338 = vmatpush1.bf16.xpose.msra.mxu0 0
    %339 = vmatprep.subr.bf16.mxu0 0
    %340 = vmatpush1.bf16.xpose.msra.mxu0 0
    %341 = vmatprep.subr.bf16.mxu0 0
    %342 = vmatpush1.bf16.xpose.msra.mxu0 0
    %343 = vmatprep.subr.bf16.mxu0 0
    %344 = vmatpush1.bf16.xpose.msra.mxu0 0
    %345 = vmatprep.subr.bf16.mxu0 0
    %346 = vmatpush1.bf16.xpose.msra.mxu0 0
    %347 = vmatprep.subr.bf16.mxu0 0
    %348 = vmatpush1.bf16.xpose.msra.mxu0 0
    %349 = vmatprep.subr.bf16.mxu0 0
    %350 = vmatpush1.bf16.xpose.msra.mxu0 0
    %351 = vmatprep.subr.bf16.mxu0 0
    %352 = vmatpush1.bf16.xpose.msra.mxu0 0
    %353 = vmatprep.subr.bf16.mxu0 0
    %354 = vmatpush1.bf16.xpose.msra.mxu0 0
    %355 = vmatprep.subr.bf16.mxu0 0
    %356 = vmatpush1.bf16.xpose.msra.mxu0 0
    %357 = vmatprep.subr.bf16.mxu0 0
    %358 = vmatpush1.bf16.xpose.msra.mxu0 0
    %359 = vmatprep.mubr.bf16.mxu0 0
    %360 = vmatmul.mubr.bf16.gmra.mrb[0].mxu0 %v322
    %v361 = vpop.f32.mrb[0].mxu0
    %v362 = vadd.f32 0.0, %v361
    %v363 = vpop.f32.mrb[0].mxu0
    %v364 = vpop.f32.mrb[0].mxu0
    %v365 = vpop.f32.mrb[0].mxu0
    %366 = vdwg.mxu0
    %v367 = vsel %vm32, %v362, -1e+30
    %v368 = vsel %vm211, %v367, -inf
    %369 = vmax.xlane.f32.xlu0 %v368
    %v370 = vpop.xlane.xlu0 %369
    %v371 = vsub.f32 %v367, %v370
    %v372 = vmul.f32 %v371, 1.442695
    %v373 = vpow.pop %v372
    %v374 = vsel %vm211, %v373, 0.0
    %375 = vadd.xlane.f32.xlu0 %v374
    %v376 = vpop.xlane.xlu0 %375
    %v377 = vrcp.pop %v376
    %v378 = vmul.f32 %v373, %v377
    %v379 = vpack.c.bf16 %v378, %v378
    %v381 = vsel %vm211, %v379, 0
    %v384 = vsel %vm274, %v320, 0
    %386 = vmatprep.subr.bf16.mxu0 0
    %387 = vmatpush1.bf16.msra.mxu0 %v384
    %388 = vmatprep.subr.bf16.mxu0 0
    %389 = vmatpush1.bf16.msra.mxu0 0
    %390 = vmatprep.subr.bf16.mxu0 0
    %391 = vmatpush1.bf16.msra.mxu0 0
    %392 = vmatprep.subr.bf16.mxu0 0
    %393 = vmatpush1.bf16.msra.mxu0 0
    %394 = vmatprep.subr.bf16.mxu0 0
    %395 = vmatpush1.bf16.msra.mxu0 0
    %396 = vmatprep.subr.bf16.mxu0 0
    %397 = vmatpush1.bf16.msra.mxu0 0
    %398 = vmatprep.subr.bf16.mxu0 0
    %399 = vmatpush1.bf16.msra.mxu0 0
    %400 = vmatprep.subr.bf16.mxu0 0
    %401 = vmatpush1.bf16.msra.mxu0 0
    %402 = vmatprep.subr.bf16.mxu0 0
    %403 = vmatpush1.bf16.msra.mxu0 0
    %404 = vmatprep.subr.bf16.mxu0 0
    %405 = vmatpush1.bf16.msra.mxu0 0
    %406 = vmatprep.subr.bf16.mxu0 0
    %407 = vmatpush1.bf16.msra.mxu0 0
    %408 = vmatprep.subr.bf16.mxu0 0
    %409 = vmatpush1.bf16.msra.mxu0 0
    %410 = vmatprep.subr.bf16.mxu0 0
    %411 = vmatpush1.bf16.msra.mxu0 0
    %412 = vmatprep.subr.bf16.mxu0 0
    %413 = vmatpush1.bf16.msra.mxu0 0
    %414 = vmatprep.subr.bf16.mxu0 0
    %415 = vmatpush1.bf16.msra.mxu0 0
    %416 = vmatprep.subr.bf16.mxu0 0
    %417 = vmatpush1.bf16.msra.mxu0 0
    %418 = vmatprep.mubr.bf16.mxu0 0
    %419 = vmatmul.mubr.bf16.gmra.mrb[0].mxu0 %v381
    %v420 = vpop.f32.mrb[0].mxu0
    %v421 = vadd.f32 0.0, %v420
    %v422 = vpop.f32.mrb[0].mxu0
    %v423 = vpop.f32.mrb[0].mxu0
    %v424 = vpop.f32.mrb[0].mxu0
    %425 = vdwg.mxu0
    %v426 = vpack.c.bf16 %v421, %v313
    %v427 = vld [vmem:[%s4] sm:$0xf]
    %s428 = scalar_lea.vmem %s1, 16
    %v429 = vld [vmem:[%s428] sm:$0xf]
    %v430 = vld [vmem:[%s428 + $0x4] sm:$0xf]
    %v431 = vld [vmem:[%s428 + $0x8] sm:$0xf]
    %v432 = vld [vmem:[%s428 + $0xc] sm:$0xf]
    %v437 = vunpack.c.l.b16 %v429
    %v438 = vunpack.c.l.b16 %v430
    %v439 = vunpack.c.l.b16 %v431
    %v440 = vunpack.c.l.b16 %v432
    %v441 = vpack.c.b16 %v438, %v437
    %v442 = vpack.c.b16 %v440, %v439
    %445 = vmatprep.subr.bf16.mxu0 0
    %446 = vmatpush1.bf16.msra.mxu0 %v441
    %447 = vmatprep.subr.bf16.mxu0 0
    %448 = vmatpush1.bf16.msra.mxu0 %v442
    %449 = vmatprep.subr.bf16.mxu0 0
    %450 = vmatpush1.bf16.msra.mxu0 0
    %451 = vmatprep.subr.bf16.mxu0 0
    %452 = vmatpush1.bf16.msra.mxu0 0
    %453 = vmatprep.subr.bf16.mxu0 0
    %454 = vmatpush1.bf16.msra.mxu0 0
    %455 = vmatprep.subr.bf16.mxu0 0
    %456 = vmatpush1.bf16.msra.mxu0 0
    %457 = vmatprep.subr.bf16.mxu0 0
    %458 = vmatpush1.bf16.msra.mxu0 0
    %459 = vmatprep.subr.bf16.mxu0 0
    %460 = vmatpush1.bf16.msra.mxu0 0
    %461 = vmatprep.subr.bf16.mxu0 0
    %462 = vmatpush1.bf16.msra.mxu0 0
    %463 = vmatprep.subr.bf16.mxu0 0
    %464 = vmatpush1.bf16.msra.mxu0 0
    %465 = vmatprep.subr.bf16.mxu0 0
    %466 = vmatpush1.bf16.msra.mxu0 0
    %467 = vmatprep.subr.bf16.mxu0 0
    %468 = vmatpush1.bf16.msra.mxu0 0
    %469 = vmatprep.subr.bf16.mxu0 0
    %470 = vmatpush1.bf16.msra.mxu0 0
    %471 = vmatprep.subr.bf16.mxu0 0
    %472 = vmatpush1.bf16.msra.mxu0 0
    %473 = vmatprep.subr.bf16.mxu0 0
    %474 = vmatpush1.bf16.msra.mxu0 0
    %475 = vmatprep.subr.bf16.mxu0 0
    %476 = vmatpush1.bf16.msra.mxu0 0
    %477 = vmatprep.mubr.bf16.mxu0 0
    %478 = vmatmul.mubr.bf16.gmra.mrb[0].mxu0 %v51
    %v479 = vpop.f32.mrb[0].mxu0
    %v480 = vadd.f32 0.0, %v479
    %v481 = vpop.f32.mrb[0].mxu0
    %v482 = vpop.f32.mrb[0].mxu0
    %v483 = vadd.f32 0.0, %v482
    %v484 = vpop.f32.mrb[0].mxu0
    %485 = vdwg.mxu0
    %s486 = scalar_lea.vmem %s2, 16
    %v487 = vld [vmem:[%s486] sm:$0xf]
    %v488 = vld [vmem:[%s486 + $0x4] sm:$0xf]
    %v489 = vld [vmem:[%s486 + $0x8] sm:$0xf]
    %v490 = vld [vmem:[%s486 + $0xc] sm:$0xf]
    %v495 = vunpack.c.l.b16 %v487
    %v496 = vunpack.c.l.b16 %v488
    %v497 = vunpack.c.l.b16 %v489
    %v498 = vunpack.c.l.b16 %v490
    %v499 = vpack.c.b16 %v496, %v495
    %v500 = vpack.c.b16 %v498, %v497
    %503 = vmatprep.subr.bf16.mxu0 0
    %504 = vmatpush1.bf16.msra.mxu0 %v499
    %505 = vmatprep.subr.bf16.mxu0 0
    %506 = vmatpush1.bf16.msra.mxu0 %v500
    %507 = vmatprep.subr.bf16.mxu0 0
    %508 = vmatpush1.bf16.msra.mxu0 0
    %509 = vmatprep.subr.bf16.mxu0 0
    %510 = vmatpush1.bf16.msra.mxu0 0
    %511 = vmatprep.subr.bf16.mxu0 0
    %512 = vmatpush1.bf16.msra.mxu0 0
    %513 = vmatprep.subr.bf16.mxu0 0
    %514 = vmatpush1.bf16.msra.mxu0 0
    %515 = vmatprep.subr.bf16.mxu0 0
    %516 = vmatpush1.bf16.msra.mxu0 0
    %517 = vmatprep.subr.bf16.mxu0 0
    %518 = vmatpush1.bf16.msra.mxu0 0
    %519 = vmatprep.subr.bf16.mxu0 0
    %520 = vmatpush1.bf16.msra.mxu0 0
    %521 = vmatprep.subr.bf16.mxu0 0
    %522 = vmatpush1.bf16.msra.mxu0 0
    %523 = vmatprep.subr.bf16.mxu0 0
    %524 = vmatpush1.bf16.msra.mxu0 0
    %525 = vmatprep.subr.bf16.mxu0 0
    %526 = vmatpush1.bf16.msra.mxu0 0
    %527 = vmatprep.subr.bf16.mxu0 0
    %528 = vmatpush1.bf16.msra.mxu0 0
    %529 = vmatprep.subr.bf16.mxu0 0
    %530 = vmatpush1.bf16.msra.mxu0 0
    %531 = vmatprep.subr.bf16.mxu0 0
    %532 = vmatpush1.bf16.msra.mxu0 0
    %533 = vmatprep.subr.bf16.mxu0 0
    %534 = vmatpush1.bf16.msra.mxu0 0
    %535 = vmatprep.mubr.bf16.mxu0 0
    %536 = vmatmul.mubr.bf16.gmra.mrb[0].mxu0 %v51
    %v537 = vpop.f32.mrb[0].mxu0
    %v538 = vadd.f32 0.0, %v537
    %v539 = vpop.f32.mrb[0].mxu0
    %v540 = vpop.f32.mrb[0].mxu0
    %v541 = vadd.f32 0.0, %v540
    %v542 = vpop.f32.mrb[0].mxu0
    %543 = vdwg.mxu0
    %s544 = scalar_lea.vmem %s3, 16
    %v545 = vld [vmem:[%s544] sm:$0xf]
    %v546 = vld [vmem:[%s544 + $0x4] sm:$0xf]
    %v547 = vld [vmem:[%s544 + $0x8] sm:$0xf]
    %v548 = vld [vmem:[%s544 + $0xc] sm:$0xf]
    %v553 = vunpack.c.l.b16 %v545
    %v554 = vunpack.c.l.b16 %v546
    %v555 = vunpack.c.l.b16 %v547
    %v556 = vunpack.c.l.b16 %v548
    %v557 = vpack.c.b16 %v554, %v553
    %v558 = vpack.c.b16 %v556, %v555
    %561 = vmatprep.subr.bf16.mxu0 0
    %562 = vmatpush1.bf16.msra.mxu0 %v557
    %563 = vmatprep.subr.bf16.mxu0 0
    %564 = vmatpush1.bf16.msra.mxu0 %v558
    %565 = vmatprep.subr.bf16.mxu0 0
    %566 = vmatpush1.bf16.msra.mxu0 0
    %567 = vmatprep.subr.bf16.mxu0 0
    %568 = vmatpush1.bf16.msra.mxu0 0
    %569 = vmatprep.subr.bf16.mxu0 0
    %570 = vmatpush1.bf16.msra.mxu0 0
    %571 = vmatprep.subr.bf16.mxu0 0
    %572 = vmatpush1.bf16.msra.mxu0 0
    %573 = vmatprep.subr.bf16.mxu0 0
    %574 = vmatpush1.bf16.msra.mxu0 0
    %575 = vmatprep.subr.bf16.mxu0 0
    %576 = vmatpush1.bf16.msra.mxu0 0
    %577 = vmatprep.subr.bf16.mxu0 0
    %578 = vmatpush1.bf16.msra.mxu0 0
    %579 = vmatprep.subr.bf16.mxu0 0
    %580 = vmatpush1.bf16.msra.mxu0 0
    %581 = vmatprep.subr.bf16.mxu0 0
    %582 = vmatpush1.bf16.msra.mxu0 0
    %583 = vmatprep.subr.bf16.mxu0 0
    %584 = vmatpush1.bf16.msra.mxu0 0
    %585 = vmatprep.subr.bf16.mxu0 0
    %586 = vmatpush1.bf16.msra.mxu0 0
    %587 = vmatprep.subr.bf16.mxu0 0
    %588 = vmatpush1.bf16.msra.mxu0 0
    %589 = vmatprep.subr.bf16.mxu0 0
    %590 = vmatpush1.bf16.msra.mxu0 0
    %591 = vmatprep.subr.bf16.mxu0 0
    %592 = vmatpush1.bf16.msra.mxu0 0
    %593 = vmatprep.mubr.bf16.mxu0 0
    %594 = vmatmul.mubr.bf16.gmra.mrb[0].mxu0 %v51
    %v595 = vpop.f32.mrb[0].mxu0
    %v596 = vadd.f32 0.0, %v595
    %v597 = vpop.f32.mrb[0].mxu0
    %v598 = vpop.f32.mrb[0].mxu0
    %v599 = vadd.f32 0.0, %v598
    %v600 = vpop.f32.mrb[0].mxu0
    %601 = vdwg.mxu0
    %v602 = vpack.c.bf16 %v480, %v480
    %v603 = vpack.c.bf16 %v538, %v538
    %v604 = vpack.c.bf16 %v596, %v596
    %v606 = vsel %vm211, %v602, 0
    %v609 = vsel %vm211, %v603, 0
    %611 = vmatprep.subr.bf16.mxu0 0
    %612 = vmatpush1.bf16.xpose.msra.mxu0 %v609
    %613 = vmatprep.subr.bf16.mxu0 0
    %614 = vmatpush1.bf16.xpose.msra.mxu0 0
    %615 = vmatprep.subr.bf16.mxu0 0
    %616 = vmatpush1.bf16.xpose.msra.mxu0 0
    %617 = vmatprep.subr.bf16.mxu0 0
    %618 = vmatpush1.bf16.xpose.msra.mxu0 0
    %619 = vmatprep.subr.bf16.mxu0 0
    %620 = vmatpush1.bf16.xpose.msra.mxu0 0
    %621 = vmatprep.subr.bf16.mxu0 0
    %622 = vmatpush1.bf16.xpose.msra.mxu0 0
    %623 = vmatprep.subr.bf16.mxu0 0
    %624 = vmatpush1.bf16.xpose.msra.mxu0 0
    %625 = vmatprep.subr.bf16.mxu0 0
    %626 = vmatpush1.bf16.xpose.msra.mxu0 0
    %627 = vmatprep.subr.bf16.mxu0 0
    %628 = vmatpush1.bf16.xpose.msra.mxu0 0
    %629 = vmatprep.subr.bf16.mxu0 0
    %630 = vmatpush1.bf16.xpose.msra.mxu0 0
    %631 = vmatprep.subr.bf16.mxu0 0
    %632 = vmatpush1.bf16.xpose.msra.mxu0 0
    %633 = vmatprep.subr.bf16.mxu0 0
    %634 = vmatpush1.bf16.xpose.msra.mxu0 0
    %635 = vmatprep.subr.bf16.mxu0 0
    %636 = vmatpush1.bf16.xpose.msra.mxu0 0
    %637 = vmatprep.subr.bf16.mxu0 0
    %638 = vmatpush1.bf16.xpose.msra.mxu0 0
    %639 = vmatprep.subr.bf16.mxu0 0
    %640 = vmatpush1.bf16.xpose.msra.mxu0 0
    %641 = vmatprep.subr.bf16.mxu0 0
    %642 = vmatpush1.bf16.xpose.msra.mxu0 0
    %643 = vmatprep.mubr.bf16.mxu0 0
    %644 = vmatmul.mubr.bf16.gmra.mrb[0].mxu0 %v606
    %v645 = vpop.f32.mrb[0].mxu0
    %v646 = vadd.f32 0.0, %v645
    %v647 = vpop.f32.mrb[0].mxu0
    %v648 = vpop.f32.mrb[0].mxu0
    %v649 = vpop.f32.mrb[0].mxu0
    %650 = vdwg.mxu0
    %v651 = vsel %vm32, %v646, -1e+30
    %v652 = vsel %vm211, %v651, -inf
    %653 = vmax.xlane.f32.xlu0 %v652
    %v654 = vpop.xlane.xlu0 %653
    %v655 = vsub.f32 %v651, %v654
    %v656 = vmul.f32 %v655, 1.442695
    %v657 = vpow.pop %v656
    %v658 = vsel %vm211, %v657, 0.0
    %659 = vadd.xlane.f32.xlu0 %v658
    %v660 = vpop.xlane.xlu0 %659
    %v661 = vrcp.pop %v660
    %v662 = vmul.f32 %v657, %v661
    %v663 = vpack.c.bf16 %v662, %v662
    %v665 = vsel %vm211, %v663, 0
    %v668 = vsel %vm274, %v604, 0
    %670 = vmatprep.subr.bf16.mxu0 0
    %671 = vmatpush1.bf16.msra.mxu0 %v668
    %672 = vmatprep.subr.bf16.mxu0 0
    %673 = vmatpush1.bf16.msra.mxu0 0
    %674 = vmatprep.subr.bf16.mxu0 0
    %675 = vmatpush1.bf16.msra.mxu0 0
    %676 = vmatprep.subr.bf16.mxu0 0
    %677 = vmatpush1.bf16.msra.mxu0 0
    %678 = vmatprep.subr.bf16.mxu0 0
    %679 = vmatpush1.bf16.msra.mxu0 0
    %680 = vmatprep.subr.bf16.mxu0 0
    %681 = vmatpush1.bf16.msra.mxu0 0
    %682 = vmatprep.subr.bf16.mxu0 0
    %683 = vmatpush1.bf16.msra.mxu0 0
    %684 = vmatprep.subr.bf16.mxu0 0
    %685 = vmatpush1.bf16.msra.mxu0 0
    %686 = vmatprep.subr.bf16.mxu0 0
    %687 = vmatpush1.bf16.msra.mxu0 0
    %688 = vmatprep.subr.bf16.mxu0 0
    %689 = vmatpush1.bf16.msra.mxu0 0
    %690 = vmatprep.subr.bf16.mxu0 0
    %691 = vmatpush1.bf16.msra.mxu0 0
    %692 = vmatprep.subr.bf16.mxu0 0
    %693 = vmatpush1.bf16.msra.mxu0 0
    %694 = vmatprep.subr.bf16.mxu0 0
    %695 = vmatpush1.bf16.msra.mxu0 0
    %696 = vmatprep.subr.bf16.mxu0 0
    %697 = vmatpush1.bf16.msra.mxu0 0
    %698 = vmatprep.subr.bf16.mxu0 0
    %699 = vmatpush1.bf16.msra.mxu0 0
    %700 = vmatprep.subr.bf16.mxu0 0
    %701 = vmatpush1.bf16.msra.mxu0 0
    %702 = vmatprep.mubr.bf16.mxu0 0
    %703 = vmatmul.mubr.bf16.gmra.mrb[0].mxu0 %v665
    %v704 = vpop.f32.mrb[0].mxu0
    %v705 = vadd.f32 0.0, %v704
    %v706 = vpop.f32.mrb[0].mxu0
    %v707 = vpop.f32.mrb[0].mxu0
    %v708 = vpop.f32.mrb[0].mxu0
    %709 = vdwg.mxu0
    %v710 = vpack.c.bf16 %v483, %v483
    %v711 = vpack.c.bf16 %v541, %v541
    %v712 = vpack.c.bf16 %v599, %v599
    %v714 = vsel %vm211, %v710, 0
    %v717 = vsel %vm211, %v711, 0
    %719 = vmatprep.subr.bf16.mxu0 0
    %720 = vmatpush1.bf16.xpose.msra.mxu0 %v717
    %721 = vmatprep.subr.bf16.mxu0 0
    %722 = vmatpush1.bf16.xpose.msra.mxu0 0
    %723 = vmatprep.subr.bf16.mxu0 0
    %724 = vmatpush1.bf16.xpose.msra.mxu0 0
    %725 = vmatprep.subr.bf16.mxu0 0
    %726 = vmatpush1.bf16.xpose.msra.mxu0 0
    %727 = vmatprep.subr.bf16.mxu0 0
    %728 = vmatpush1.bf16.xpose.msra.mxu0 0
    %729 = vmatprep.subr.bf16.mxu0 0
    %730 = vmatpush1.bf16.xpose.msra.mxu0 0
    %731 = vmatprep.subr.bf16.mxu0 0
    %732 = vmatpush1.bf16.xpose.msra.mxu0 0
    %733 = vmatprep.subr.bf16.mxu0 0
    %734 = vmatpush1.bf16.xpose.msra.mxu0 0
    %735 = vmatprep.subr.bf16.mxu0 0
    %736 = vmatpush1.bf16.xpose.msra.mxu0 0
    %737 = vmatprep.subr.bf16.mxu0 0
    %738 = vmatpush1.bf16.xpose.msra.mxu0 0
    %739 = vmatprep.subr.bf16.mxu0 0
    %740 = vmatpush1.bf16.xpose.msra.mxu0 0
    %741 = vmatprep.subr.bf16.mxu0 0
    %742 = vmatpush1.bf16.xpose.msra.mxu0 0
    %743 = vmatprep.subr.bf16.mxu0 0
    %744 = vmatpush1.bf16.xpose.msra.mxu0 0
    %745 = vmatprep.subr.bf16.mxu0 0
    %746 = vmatpush1.bf16.xpose.msra.mxu0 0
    %747 = vmatprep.subr.bf16.mxu0 0
    %748 = vmatpush1.bf16.xpose.msra.mxu0 0
    %749 = vmatprep.subr.bf16.mxu0 0
    %750 = vmatpush1.bf16.xpose.msra.mxu0 0
    %751 = vmatprep.mubr.bf16.mxu0 0
    %752 = vmatmul.mubr.bf16.gmra.mrb[0].mxu0 %v714
    %v753 = vpop.f32.mrb[0].mxu0
    %v754 = vadd.f32 0.0, %v753
    %v755 = vpop.f32.mrb[0].mxu0
    %v756 = vpop.f32.mrb[0].mxu0
    %v757 = vpop.f32.mrb[0].mxu0
    %758 = vdwg.mxu0
    %v759 = vsel %vm32, %v754, -1e+30
    %v760 = vsel %vm211, %v759, -inf
    %761 = vmax.xlane.f32.xlu0 %v760
    %v762 = vpop.xlane.xlu0 %761
    %v763 = vsub.f32 %v759, %v762
    %v764 = vmul.f32 %v763, 1.442695
    %v765 = vpow.pop %v764
    %v766 = vsel %vm211, %v765, 0.0
    %767 = vadd.xlane.f32.xlu0 %v766
    %v768 = vpop.xlane.xlu0 %767
    %v769 = vrcp.pop %v768
    %v770 = vmul.f32 %v765, %v769
    %v771 = vpack.c.bf16 %v770, %v770
    %v773 = vsel %vm211, %v771, 0
    %v776 = vsel %vm274, %v712, 0
    %778 = vmatprep.subr.bf16.mxu0 0
    %779 = vmatpush1.bf16.msra.mxu0 %v776
    %780 = vmatprep.subr.bf16.mxu0 0
    %781 = vmatpush1.bf16.msra.mxu0 0
    %782 = vmatprep.subr.bf16.mxu0 0
    %783 = vmatpush1.bf16.msra.mxu0 0
    %784 = vmatprep.subr.bf16.mxu0 0
    %785 = vmatpush1.bf16.msra.mxu0 0
    %786 = vmatprep.subr.bf16.mxu0 0
    %787 = vmatpush1.bf16.msra.mxu0 0
    %788 = vmatprep.subr.bf16.mxu0 0
    %789 = vmatpush1.bf16.msra.mxu0 0
    %790 = vmatprep.subr.bf16.mxu0 0
    %791 = vmatpush1.bf16.msra.mxu0 0
    %792 = vmatprep.subr.bf16.mxu0 0
    %793 = vmatpush1.bf16.msra.mxu0 0
    %794 = vmatprep.subr.bf16.mxu0 0
    %795 = vmatpush1.bf16.msra.mxu0 0
    %796 = vmatprep.subr.bf16.mxu0 0
    %797 = vmatpush1.bf16.msra.mxu0 0
    %798 = vmatprep.subr.bf16.mxu0 0
    %799 = vmatpush1.bf16.msra.mxu0 0
    %800 = vmatprep.subr.bf16.mxu0 0
    %801 = vmatpush1.bf16.msra.mxu0 0
    %802 = vmatprep.subr.bf16.mxu0 0
    %803 = vmatpush1.bf16.msra.mxu0 0
    %804 = vmatprep.subr.bf16.mxu0 0
    %805 = vmatpush1.bf16.msra.mxu0 0
    %806 = vmatprep.subr.bf16.mxu0 0
    %807 = vmatpush1.bf16.msra.mxu0 0
    %808 = vmatprep.subr.bf16.mxu0 0
    %809 = vmatpush1.bf16.msra.mxu0 0
    %810 = vmatprep.mubr.bf16.mxu0 0
    %811 = vmatmul.mubr.bf16.gmra.mrb[0].mxu0 %v773
    %v812 = vpop.f32.mrb[0].mxu0
    %v813 = vadd.f32 0.0, %v812
    %v814 = vpop.f32.mrb[0].mxu0
    %v815 = vpop.f32.mrb[0].mxu0
    %v816 = vpop.f32.mrb[0].mxu0
    %817 = vdwg.mxu0
    %v818 = vpack.c.bf16 %v813, %v705
    %s819 = scalar_lea.vmem %s4, 4
    %v820 = vld [vmem:[%s819] sm:$0xf]
    %v822 = vsel %vm211, %v818, 0
    %v825 = vsel %vm274, %v820, 0
    %827 = vmatprep.subr.bf16.mxu0 0
    %828 = vmatpush1.bf16.msra.mxu0 %v825
    %829 = vmatprep.subr.bf16.mxu0 0
    %830 = vmatpush1.bf16.msra.mxu0 0
    %831 = vmatprep.subr.bf16.mxu0 0
    %832 = vmatpush1.bf16.msra.mxu0 0
    %833 = vmatprep.subr.bf16.mxu0 0
    %834 = vmatpush1.bf16.msra.mxu0 0
    %835 = vmatprep.subr.bf16.mxu0 0
    %836 = vmatpush1.bf16.msra.mxu0 0
    %837 = vmatprep.subr.bf16.mxu0 0
    %838 = vmatpush1.bf16.msra.mxu0 0
    %839 = vmatprep.subr.bf16.mxu0 0
    %840 = vmatpush1.bf16.msra.mxu0 0
    %841 = vmatprep.subr.bf16.mxu0 0
    %842 = vmatpush1.bf16.msra.mxu0 0
    %843 = vmatprep.subr.bf16.mxu0 0
    %844 = vmatpush1.bf16.msra.mxu0 0
    %845 = vmatprep.subr.bf16.mxu0 0
    %846 = vmatpush1.bf16.msra.mxu0 0
    %847 = vmatprep.subr.bf16.mxu0 0
    %848 = vmatpush1.bf16.msra.mxu0 0
    %849 = vmatprep.subr.bf16.mxu0 0
    %850 = vmatpush1.bf16.msra.mxu0 0
    %851 = vmatprep.subr.bf16.mxu0 0
    %852 = vmatpush1.bf16.msra.mxu0 0
    %853 = vmatprep.subr.bf16.mxu0 0
    %854 = vmatpush1.bf16.msra.mxu0 0
    %855 = vmatprep.subr.bf16.mxu0 0
    %856 = vmatpush1.bf16.msra.mxu0 0
    %857 = vmatprep.subr.bf16.mxu0 0
    %858 = vmatpush1.bf16.msra.mxu0 0
    %859 = vmatprep.mubr.bf16.mxu0 0
    %860 = vmatmul.mubr.bf16.gmra.mrb[0].mxu0 %v822
    %v861 = vpop.f32.mrb[0].mxu0
    %v862 = vadd.f32 0.0, %v861
    %v863 = vpop.f32.mrb[0].mxu0
    %v864 = vpop.f32.mrb[0].mxu0
    %v865 = vadd.f32 0.0, %v864
    %v866 = vpop.f32.mrb[0].mxu0
    %867 = vdwg.mxu0
    %s868 = scalar_lea.vmem %s1, 32
    %v869 = vld [vmem:[%s868] sm:$0xf]
    %v870 = vld [vmem:[%s868 + $0x4] sm:$0xf]
    %v871 = vld [vmem:[%s868 + $0x8] sm:$0xf]
    %v872 = vld [vmem:[%s868 + $0xc] sm:$0xf]
    %v877 = vunpack.c.l.b16 %v869
    %v878 = vunpack.c.l.b16 %v870
    %v879 = vunpack.c.l.b16 %v871
    %v880 = vunpack.c.l.b16 %v872
    %v881 = vpack.c.b16 %v878, %v877
    %v882 = vpack.c.b16 %v880, %v879
    %885 = vmatprep.subr.bf16.mxu0 0
    %886 = vmatpush1.bf16.msra.mxu0 %v881
    %887 = vmatprep.subr.bf16.mxu0 0
    %888 = vmatpush1.bf16.msra.mxu0 %v882
    %889 = vmatprep.subr.bf16.mxu0 0
    %890 = vmatpush1.bf16.msra.mxu0 0
    %891 = vmatprep.subr.bf16.mxu0 0
    %892 = vmatpush1.bf16.msra.mxu0 0
    %893 = vmatprep.subr.bf16.mxu0 0
    %894 = vmatpush1.bf16.msra.mxu0 0
    %895 = vmatprep.subr.bf16.mxu0 0
    %896 = vmatpush1.bf16.msra.mxu0 0
    %897 = vmatprep.subr.bf16.mxu0 0
    %898 = vmatpush1.bf16.msra.mxu0 0
    %899 = vmatprep.subr.bf16.mxu0 0
    %900 = vmatpush1.bf16.msra.mxu0 0
    %901 = vmatprep.subr.bf16.mxu0 0
    %902 = vmatpush1.bf16.msra.mxu0 0
    %903 = vmatprep.subr.bf16.mxu0 0
    %904 = vmatpush1.bf16.msra.mxu0 0
    %905 = vmatprep.subr.bf16.mxu0 0
    %906 = vmatpush1.bf16.msra.mxu0 0
    %907 = vmatprep.subr.bf16.mxu0 0
    %908 = vmatpush1.bf16.msra.mxu0 0
    %909 = vmatprep.subr.bf16.mxu0 0
    %910 = vmatpush1.bf16.msra.mxu0 0
    %911 = vmatprep.subr.bf16.mxu0 0
    %912 = vmatpush1.bf16.msra.mxu0 0
    %913 = vmatprep.subr.bf16.mxu0 0
    %914 = vmatpush1.bf16.msra.mxu0 0
    %915 = vmatprep.subr.bf16.mxu0 0
    %916 = vmatpush1.bf16.msra.mxu0 0
    %917 = vmatprep.mubr.bf16.mxu0 0
    %918 = vmatmul.mubr.bf16.gmra.mrb[0].mxu0 %v51
    %v919 = vpop.f32.mrb[0].mxu0
    %v920 = vadd.f32 0.0, %v919
    %v921 = vpop.f32.mrb[0].mxu0
    %v922 = vpop.f32.mrb[0].mxu0
    %v923 = vadd.f32 0.0, %v922
    %v924 = vpop.f32.mrb[0].mxu0
    %925 = vdwg.mxu0
    %s926 = scalar_lea.vmem %s2, 32
    %v927 = vld [vmem:[%s926] sm:$0xf]
    %v928 = vld [vmem:[%s926 + $0x4] sm:$0xf]
    %v929 = vld [vmem:[%s926 + $0x8] sm:$0xf]
    %v930 = vld [vmem:[%s926 + $0xc] sm:$0xf]
    %v935 = vunpack.c.l.b16 %v927
    %v936 = vunpack.c.l.b16 %v928
    %v937 = vunpack.c.l.b16 %v929
    %v938 = vunpack.c.l.b16 %v930
    %v939 = vpack.c.b16 %v936, %v935
    %v940 = vpack.c.b16 %v938, %v937
    %943 = vmatprep.subr.bf16.mxu0 0
    %944 = vmatpush1.bf16.msra.mxu0 %v939
    %945 = vmatprep.subr.bf16.mxu0 0
    %946 = vmatpush1.bf16.msra.mxu0 %v940
    %947 = vmatprep.subr.bf16.mxu0 0
    %948 = vmatpush1.bf16.msra.mxu0 0
    %949 = vmatprep.subr.bf16.mxu0 0
    %950 = vmatpush1.bf16.msra.mxu0 0
    %951 = vmatprep.subr.bf16.mxu0 0
    %952 = vmatpush1.bf16.msra.mxu0 0
    %953 = vmatprep.subr.bf16.mxu0 0
    %954 = vmatpush1.bf16.msra.mxu0 0
    %955 = vmatprep.subr.bf16.mxu0 0
    %956 = vmatpush1.bf16.msra.mxu0 0
    %957 = vmatprep.subr.bf16.mxu0 0
    %958 = vmatpush1.bf16.msra.mxu0 0
    %959 = vmatprep.subr.bf16.mxu0 0
    %960 = vmatpush1.bf16.msra.mxu0 0
    %961 = vmatprep.subr.bf16.mxu0 0
    %962 = vmatpush1.bf16.msra.mxu0 0
    %963 = vmatprep.subr.bf16.mxu0 0
    %964 = vmatpush1.bf16.msra.mxu0 0
    %965 = vmatprep.subr.bf16.mxu0 0
    %966 = vmatpush1.bf16.msra.mxu0 0
    %967 = vmatprep.subr.bf16.mxu0 0
    %968 = vmatpush1.bf16.msra.mxu0 0
    %969 = vmatprep.subr.bf16.mxu0 0
    %970 = vmatpush1.bf16.msra.mxu0 0
    %971 = vmatprep.subr.bf16.mxu0 0
    %972 = vmatpush1.bf16.msra.mxu0 0
    %973 = vmatprep.subr.bf16.mxu0 0
    %974 = vmatpush1.bf16.msra.mxu0 0
    %975 = vmatprep.mubr.bf16.mxu0 0
    %976 = vmatmul.mubr.bf16.gmra.mrb[0].mxu0 %v51
    %v977 = vpop.f32.mrb[0].mxu0
    %v978 = vadd.f32 0.0, %v977
    %v979 = vpop.f32.mrb[0].mxu0
    %v980 = vpop.f32.mrb[0].mxu0
    %v981 = vadd.f32 0.0, %v980
    %v982 = vpop.f32.mrb[0].mxu0
    %983 = vdwg.mxu0
    %s984 = scalar_lea.vmem %s3, 32
    %v985 = vld [vmem:[%s984] sm:$0xf]
    %v986 = vld [vmem:[%s984 + $0x4] sm:$0xf]
    %v987 = vld [vmem:[%s984 + $0x8] sm:$0xf]
    %v988 = vld [vmem:[%s984 + $0xc] sm:$0xf]
    %v993 = vunpack.c.l.b16 %v985
    %v994 = vunpack.c.l.b16 %v986
    %v995 = vunpack.c.l.b16 %v987
    %v996 = vunpack.c.l.b16 %v988
    %v997 = vpack.c.b16 %v994, %v993
    %v998 = vpack.c.b16 %v996, %v995
    %1001 = vmatprep.subr.bf16.mxu0 0
    %1002 = vmatpush1.bf16.msra.mxu0 %v997
    %1003 = vmatprep.subr.bf16.mxu0 0
    %1004 = vmatpush1.bf16.msra.mxu0 %v998
    %1005 = vmatprep.subr.bf16.mxu0 0
    %1006 = vmatpush1.bf16.msra.mxu0 0
    %1007 = vmatprep.subr.bf16.mxu0 0
    %1008 = vmatpush1.bf16.msra.mxu0 0
    %1009 = vmatprep.subr.bf16.mxu0 0
    %1010 = vmatpush1.bf16.msra.mxu0 0
    %1011 = vmatprep.subr.bf16.mxu0 0
    %1012 = vmatpush1.bf16.msra.mxu0 0
    %1013 = vmatprep.subr.bf16.mxu0 0
    %1014 = vmatpush1.bf16.msra.mxu0 0
    %1015 = vmatprep.subr.bf16.mxu0 0
    %1016 = vmatpush1.bf16.msra.mxu0 0
    %1017 = vmatprep.subr.bf16.mxu0 0
    %1018 = vmatpush1.bf16.msra.mxu0 0
    %1019 = vmatprep.subr.bf16.mxu0 0
    %1020 = vmatpush1.bf16.msra.mxu0 0
    %1021 = vmatprep.subr.bf16.mxu0 0
    %1022 = vmatpush1.bf16.msra.mxu0 0
    %1023 = vmatprep.subr.bf16.mxu0 0
    %1024 = vmatpush1.bf16.msra.mxu0 0
    %1025 = vmatprep.subr.bf16.mxu0 0
    %1026 = vmatpush1.bf16.msra.mxu0 0
    %1027 = vmatprep.subr.bf16.mxu0 0
    %1028 = vmatpush1.bf16.msra.mxu0 0
    %1029 = vmatprep.subr.bf16.mxu0 0
    %1030 = vmatpush1.bf16.msra.mxu0 0
    %1031 = vmatprep.subr.bf16.mxu0 0
    %1032 = vmatpush1.bf16.msra.mxu0 0
    %1033 = vmatprep.mubr.bf16.mxu0 0
    %1034 = vmatmul.mubr.bf16.gmra.mrb[0].mxu0 %v51
    %v1035 = vpop.f32.mrb[0].mxu0
    %v1036 = vadd.f32 0.0, %v1035
    %v1037 = vpop.f32.mrb[0].mxu0
    %v1038 = vpop.f32.mrb[0].mxu0
    %v1039 = vadd.f32 0.0, %v1038
    %v1040 = vpop.f32.mrb[0].mxu0
    %1041 = vdwg.mxu0
    %v1042 = vpack.c.bf16 %v920, %v920
    %v1043 = vpack.c.bf16 %v978, %v978
    %v1044 = vpack.c.bf16 %v1036, %v1036
    %v1046 = vsel %vm211, %v1042, 0
    %v1049 = vsel %vm211, %v1043, 0
    %1051 = vmatprep.subr.bf16.mxu0 0
    %1052 = vmatpush1.bf16.xpose.msra.mxu0 %v1049
    %1053 = vmatprep.subr.bf16.mxu0 0
    %1054 = vmatpush1.bf16.xpose.msra.mxu0 0
    %1055 = vmatprep.subr.bf16.mxu0 0
    %1056 = vmatpush1.bf16.xpose.msra.mxu0 0
    %1057 = vmatprep.subr.bf16.mxu0 0
    %1058 = vmatpush1.bf16.xpose.msra.mxu0 0
    %1059 = vmatprep.subr.bf16.mxu0 0
    %1060 = vmatpush1.bf16.xpose.msra.mxu0 0
    %1061 = vmatprep.subr.bf16.mxu0 0
    %1062 = vmatpush1.bf16.xpose.msra.mxu0 0
    %1063 = vmatprep.subr.bf16.mxu0 0
    %1064 = vmatpush1.bf16.xpose.msra.mxu0 0
    %1065 = vmatprep.subr.bf16.mxu0 0
    %1066 = vmatpush1.bf16.xpose.msra.mxu0 0
    %1067 = vmatprep.subr.bf16.mxu0 0
    %1068 = vmatpush1.bf16.xpose.msra.mxu0 0
    %1069 = vmatprep.subr.bf16.mxu0 0
    %1070 = vmatpush1.bf16.xpose.msra.mxu0 0
    %1071 = vmatprep.subr.bf16.mxu0 0
    %1072 = vmatpush1.bf16.xpose.msra.mxu0 0
    %1073 = vmatprep.subr.bf16.mxu0 0
    %1074 = vmatpush1.bf16.xpose.msra.mxu0 0
    %1075 = vmatprep.subr.bf16.mxu0 0
    %1076 = vmatpush1.bf16.xpose.msra.mxu0 0
    %1077 = vmatprep.subr.bf16.mxu0 0
    %1078 = vmatpush1.bf16.xpose.msra.mxu0 0
    %1079 = vmatprep.subr.bf16.mxu0 0
    %1080 = vmatpush1.bf16.xpose.msra.mxu0 0
    %1081 = vmatprep.subr.bf16.mxu0 0
    %1082 = vmatpush1.bf16.xpose.msra.mxu0 0
    %1083 = vmatprep.mubr.bf16.mxu0 0
    %1084 = vmatmul.mubr.bf16.gmra.mrb[0].mxu0 %v1046
    %v1085 = vpop.f32.mrb[0].mxu0
    %v1086 = vadd.f32 0.0, %v1085
    %v1087 = vpop.f32.mrb[0].mxu0
    %v1088 = vpop.f32.mrb[0].mxu0
    %v1089 = vpop.f32.mrb[0].mxu0
    %1090 = vdwg.mxu0
    %v1091 = vsel %vm32, %v1086, -1e+30
    %v1092 = vsel %vm211, %v1091, -inf
    %1093 = vmax.xlane.f32.xlu0 %v1092
    %v1094 = vpop.xlane.xlu0 %1093
    %v1095 = vsub.f32 %v1091, %v1094
    %v1096 = vmul.f32 %v1095, 1.442695
    %v1097 = vpow.pop %v1096
    %v1098 = vsel %vm211, %v1097, 0.0
    %1099 = vadd.xlane.f32.xlu0 %v1098
    %v1100 = vpop.xlane.xlu0 %1099
    %v1101 = vrcp.pop %v1100
    %v1102 = vmul.f32 %v1097, %v1101
    %v1103 = vpack.c.bf16 %v1102, %v1102
    %v1105 = vsel %vm211, %v1103, 0
    %v1108 = vsel %vm274, %v1044, 0
    %1110 = vmatprep.subr.bf16.mxu0 0
    %1111 = vmatpush1.bf16.msra.mxu0 %v1108
    %1112 = vmatprep.subr.bf16.mxu0 0
    %1113 = vmatpush1.bf16.msra.mxu0 0
    %1114 = vmatprep.subr.bf16.mxu0 0
    %1115 = vmatpush1.bf16.msra.mxu0 0
    %1116 = vmatprep.subr.bf16.mxu0 0
    %1117 = vmatpush1.bf16.msra.mxu0 0
    %1118 = vmatprep.subr.bf16.mxu0 0
    %1119 = vmatpush1.bf16.msra.mxu0 0
    %1120 = vmatprep.subr.bf16.mxu0 0
    %1121 = vmatpush1.bf16.msra.mxu0 0
    %1122 = vmatprep.subr.bf16.mxu0 0
    %1123 = vmatpush1.bf16.msra.mxu0 0
    %1124 = vmatprep.subr.bf16.mxu0 0
    %1125 = vmatpush1.bf16.msra.mxu0 0
    %1126 = vmatprep.subr.bf16.mxu0 0
    %1127 = vmatpush1.bf16.msra.mxu0 0
    %1128 = vmatprep.subr.bf16.mxu0 0
    %1129 = vmatpush1.bf16.msra.mxu0 0
    %1130 = vmatprep.subr.bf16.mxu0 0
    %1131 = vmatpush1.bf16.msra.mxu0 0
    %1132 = vmatprep.subr.bf16.mxu0 0
    %1133 = vmatpush1.bf16.msra.mxu0 0
    %1134 = vmatprep.subr.bf16.mxu0 0
    %1135 = vmatpush1.bf16.msra.mxu0 0
    %1136 = vmatprep.subr.bf16.mxu0 0
    %1137 = vmatpush1.bf16.msra.mxu0 0
    %1138 = vmatprep.subr.bf16.mxu0 0
    %1139 = vmatpush1.bf16.msra.mxu0 0
    %1140 = vmatprep.subr.bf16.mxu0 0
    %1141 = vmatpush1.bf16.msra.mxu0 0
    %1142 = vmatprep.mubr.bf16.mxu0 0
    %1143 = vmatmul.mubr.bf16.gmra.mrb[0].mxu0 %v1105
    %v1144 = vpop.f32.mrb[0].mxu0
    %v1145 = vadd.f32 0.0, %v1144
    %v1146 = vpop.f32.mrb[0].mxu0
    %v1147 = vpop.f32.mrb[0].mxu0
    %v1148 = vpop.f32.mrb[0].mxu0
    %1149 = vdwg.mxu0
    %v1150 = vpack.c.bf16 %v923, %v923
    %v1151 = vpack.c.bf16 %v981, %v981
    %v1152 = vpack.c.bf16 %v1039, %v1039
    %v1154 = vsel %vm211, %v1150, 0
    %v1157 = vsel %vm211, %v1151, 0
    %1159 = vmatprep.subr.bf16.mxu0 0
    %1160 = vmatpush1.bf16.xpose.msra.mxu0 %v1157
    %1161 = vmatprep.subr.bf16.mxu0 0
    %1162 = vmatpush1.bf16.xpose.msra.mxu0 0
    %1163 = vmatprep.subr.bf16.mxu0 0
    %1164 = vmatpush1.bf16.xpose.msra.mxu0 0
    %1165 = vmatprep.subr.bf16.mxu0 0
    %1166 = vmatpush1.bf16.xpose.msra.mxu0 0
    %1167 = vmatprep.subr.bf16.mxu0 0
    %1168 = vmatpush1.bf16.xpose.msra.mxu0 0
    %1169 = vmatprep.subr.bf16.mxu0 0
    %1170 = vmatpush1.bf16.xpose.msra.mxu0 0
    %1171 = vmatprep.subr.bf16.mxu0 0
    %1172 = vmatpush1.bf16.xpose.msra.mxu0 0
    %1173 = vmatprep.subr.bf16.mxu0 0
    %1174 = vmatpush1.bf16.xpose.msra.mxu0 0
    %1175 = vmatprep.subr.bf16.mxu0 0
    %1176 = vmatpush1.bf16.xpose.msra.mxu0 0
    %1177 = vmatprep.subr.bf16.mxu0 0
    %1178 = vmatpush1.bf16.xpose.msra.mxu0 0
    %1179 = vmatprep.subr.bf16.mxu0 0
    %1180 = vmatpush1.bf16.xpose.msra.mxu0 0
    %1181 = vmatprep.subr.bf16.mxu0 0
    %1182 = vmatpush1.bf16.xpose.msra.mxu0 0
    %1183 = vmatprep.subr.bf16.mxu0 0
    %1184 = vmatpush1.bf16.xpose.msra.mxu0 0
    %1185 = vmatprep.subr.bf16.mxu0 0
    %1186 = vmatpush1.bf16.xpose.msra.mxu0 0
    %1187 = vmatprep.subr.bf16.mxu0 0
    %1188 = vmatpush1.bf16.xpose.msra.mxu0 0
    %1189 = vmatprep.subr.bf16.mxu0 0
    %1190 = vmatpush1.bf16.xpose.msra.mxu0 0
    %1191 = vmatprep.mubr.bf16.mxu0 0
    %1192 = vmatmul.mubr.bf16.gmra.mrb[0].mxu0 %v1154
    %v1193 = vpop.f32.mrb[0].mxu0
    %v1194 = vadd.f32 0.0, %v1193
    %v1195 = vpop.f32.mrb[0].mxu0
    %v1196 = vpop.f32.mrb[0].mxu0
    %v1197 = vpop.f32.mrb[0].mxu0
    %1198 = vdwg.mxu0
    %v1199 = vsel %vm32, %v1194, -1e+30
    %v1200 = vsel %vm211, %v1199, -inf
    %1201 = vmax.xlane.f32.xlu0 %v1200
    %v1202 = vpop.xlane.xlu0 %1201
    %v1203 = vsub.f32 %v1199, %v1202
    %v1204 = vmul.f32 %v1203, 1.442695
    %v1205 = vpow.pop %v1204
    %v1206 = vsel %vm211, %v1205, 0.0
    %1207 = vadd.xlane.f32.xlu0 %v1206
    %v1208 = vpop.xlane.xlu0 %1207
    %v1209 = vrcp.pop %v1208
    %v1210 = vmul.f32 %v1205, %v1209
    %v1211 = vpack.c.bf16 %v1210, %v1210
    %v1213 = vsel %vm211, %v1211, 0
    %v1216 = vsel %vm274, %v1152, 0
    %1218 = vmatprep.subr.bf16.mxu0 0
    %1219 = vmatpush1.bf16.msra.mxu0 %v1216
    %1220 = vmatprep.subr.bf16.mxu0 0
    %1221 = vmatpush1.bf16.msra.mxu0 0
    %1222 = vmatprep.subr.bf16.mxu0 0
    %1223 = vmatpush1.bf16.msra.mxu0 0
    %1224 = vmatprep.subr.bf16.mxu0 0
    %1225 = vmatpush1.bf16.msra.mxu0 0
    %1226 = vmatprep.subr.bf16.mxu0 0
    %1227 = vmatpush1.bf16.msra.mxu0 0
    %1228 = vmatprep.subr.bf16.mxu0 0
    %1229 = vmatpush1.bf16.msra.mxu0 0
    %1230 = vmatprep.subr.bf16.mxu0 0
    %1231 = vmatpush1.bf16.msra.mxu0 0
    %1232 = vmatprep.subr.bf16.mxu0 0
    %1233 = vmatpush1.bf16.msra.mxu0 0
    %1234 = vmatprep.subr.bf16.mxu0 0
    %1235 = vmatpush1.bf16.msra.mxu0 0
    %1236 = vmatprep.subr.bf16.mxu0 0
    %1237 = vmatpush1.bf16.msra.mxu0 0
    %1238 = vmatprep.subr.bf16.mxu0 0
    %1239 = vmatpush1.bf16.msra.mxu0 0
    %1240 = vmatprep.subr.bf16.mxu0 0
    %1241 = vmatpush1.bf16.msra.mxu0 0
    %1242 = vmatprep.subr.bf16.mxu0 0
    %1243 = vmatpush1.bf16.msra.mxu0 0
    %1244 = vmatprep.subr.bf16.mxu0 0
    %1245 = vmatpush1.bf16.msra.mxu0 0
    %1246 = vmatprep.subr.bf16.mxu0 0
    %1247 = vmatpush1.bf16.msra.mxu0 0
    %1248 = vmatprep.subr.bf16.mxu0 0
    %1249 = vmatpush1.bf16.msra.mxu0 0
    %1250 = vmatprep.mubr.bf16.mxu0 0
    %1251 = vmatmul.mubr.bf16.gmra.mrb[0].mxu0 %v1213
    %v1252 = vpop.f32.mrb[0].mxu0
    %v1253 = vadd.f32 0.0, %v1252
    %v1254 = vpop.f32.mrb[0].mxu0
    %v1255 = vpop.f32.mrb[0].mxu0
    %v1256 = vpop.f32.mrb[0].mxu0
    %1257 = vdwg.mxu0
    %v1258 = vpack.c.bf16 %v1253, %v1145
    %s1259 = scalar_lea.vmem %s4, 8
    %v1260 = vld [vmem:[%s1259] sm:$0xf]
    %v1262 = vsel %vm211, %v1258, 0
    %v1265 = vsel %vm274, %v1260, 0
    %1267 = vmatprep.subr.bf16.mxu0 0
    %1268 = vmatpush1.bf16.msra.mxu0 %v1265
    %1269 = vmatprep.subr.bf16.mxu0 0
    %1270 = vmatpush1.bf16.msra.mxu0 0
    %1271 = vmatprep.subr.bf16.mxu0 0
    %1272 = vmatpush1.bf16.msra.mxu0 0
    %1273 = vmatprep.subr.bf16.mxu0 0
    %1274 = vmatpush1.bf16.msra.mxu0 0
    %1275 = vmatprep.subr.bf16.mxu0 0
    %1276 = vmatpush1.bf16.msra.mxu0 0
    %1277 = vmatprep.subr.bf16.mxu0 0
    %1278 = vmatpush1.bf16.msra.mxu0 0
    %1279 = vmatprep.subr.bf16.mxu0 0
    %1280 = vmatpush1.bf16.msra.mxu0 0
    %1281 = vmatprep.subr.bf16.mxu0 0
    %1282 = vmatpush1.bf16.msra.mxu0 0
    %1283 = vmatprep.subr.bf16.mxu0 0
    %1284 = vmatpush1.bf16.msra.mxu0 0
    %1285 = vmatprep.subr.bf16.mxu0 0
    %1286 = vmatpush1.bf16.msra.mxu0 0
    %1287 = vmatprep.subr.bf16.mxu0 0
    %1288 = vmatpush1.bf16.msra.mxu0 0
    %1289 = vmatprep.subr.bf16.mxu0 0
    %1290 = vmatpush1.bf16.msra.mxu0 0
    %1291 = vmatprep.subr.bf16.mxu0 0
    %1292 = vmatpush1.bf16.msra.mxu0 0
    %1293 = vmatprep.subr.bf16.mxu0 0
    %1294 = vmatpush1.bf16.msra.mxu0 0
    %1295 = vmatprep.subr.bf16.mxu0 0
    %1296 = vmatpush1.bf16.msra.mxu0 0
    %1297 = vmatprep.subr.bf16.mxu0 0
    %1298 = vmatpush1.bf16.msra.mxu0 0
    %1299 = vmatprep.mubr.bf16.mxu0 0
    %1300 = vmatmul.mubr.bf16.gmra.mrb[0].mxu0 %v1262
    %v1301 = vpop.f32.mrb[0].mxu0
    %v1302 = vadd.f32 0.0, %v1301
    %v1303 = vpop.f32.mrb[0].mxu0
    %v1304 = vpop.f32.mrb[0].mxu0
    %v1305 = vadd.f32 0.0, %v1304
    %v1306 = vpop.f32.mrb[0].mxu0
    %1307 = vdwg.mxu0
    %s1308 = scalar_lea.vmem %s1, 48
    %v1309 = vld [vmem:[%s1308] sm:$0xf]
    %v1310 = vld [vmem:[%s1308 + $0x4] sm:$0xf]
    %v1311 = vld [vmem:[%s1308 + $0x8] sm:$0xf]
    %v1312 = vld [vmem:[%s1308 + $0xc] sm:$0xf]
    %v1317 = vunpack.c.l.b16 %v1309
    %v1318 = vunpack.c.l.b16 %v1310
    %v1319 = vunpack.c.l.b16 %v1311
    %v1320 = vunpack.c.l.b16 %v1312
    %v1321 = vpack.c.b16 %v1318, %v1317
    %v1322 = vpack.c.b16 %v1320, %v1319
    %1325 = vmatprep.subr.bf16.mxu0 0
    %1326 = vmatpush1.bf16.msra.mxu0 %v1321
    %1327 = vmatprep.subr.bf16.mxu0 0
    %1328 = vmatpush1.bf16.msra.mxu0 %v1322
    %1329 = vmatprep.subr.bf16.mxu0 0
    %1330 = vmatpush1.bf16.msra.mxu0 0
    %1331 = vmatprep.subr.bf16.mxu0 0
    %1332 = vmatpush1.bf16.msra.mxu0 0
    %1333 = vmatprep.subr.bf16.mxu0 0
    %1334 = vmatpush1.bf16.msra.mxu0 0
    %1335 = vmatprep.subr.bf16.mxu0 0
    %1336 = vmatpush1.bf16.msra.mxu0 0
    %1337 = vmatprep.subr.bf16.mxu0 0
    %1338 = vmatpush1.bf16.msra.mxu0 0
    %1339 = vmatprep.subr.bf16.mxu0 0
    %1340 = vmatpush1.bf16.msra.mxu0 0
    %1341 = vmatprep.subr.bf16.mxu0 0
    %1342 = vmatpush1.bf16.msra.mxu0 0
    %1343 = vmatprep.subr.bf16.mxu0 0
    %1344 = vmatpush1.bf16.msra.mxu0 0
    %1345 = vmatprep.subr.bf16.mxu0 0
    %1346 = vmatpush1.bf16.msra.mxu0 0
    %1347 = vmatprep.subr.bf16.mxu0 0
    %1348 = vmatpush1.bf16.msra.mxu0 0
    %1349 = vmatprep.subr.bf16.mxu0 0
    %1350 = vmatpush1.bf16.msra.mxu0 0
    %1351 = vmatprep.subr.bf16.mxu0 0
    %1352 = vmatpush1.bf16.msra.mxu0 0
    %1353 = vmatprep.subr.bf16.mxu0 0
    %1354 = vmatpush1.bf16.msra.mxu0 0
    %1355 = vmatprep.subr.bf16.mxu0 0
    %1356 = vmatpush1.bf16.msra.mxu0 0
    %1357 = vmatprep.mubr.bf16.mxu0 0
    %1358 = vmatmul.mubr.bf16.gmra.mrb[0].mxu0 %v51
    %v1359 = vpop.f32.mrb[0].mxu0
    %v1360 = vadd.f32 0.0, %v1359
    %v1361 = vpop.f32.mrb[0].mxu0
    %v1362 = vpop.f32.mrb[0].mxu0
    %v1363 = vadd.f32 0.0, %v1362
    %v1364 = vpop.f32.mrb[0].mxu0
    %1365 = vdwg.mxu0
    %s1366 = scalar_lea.vmem %s2, 48
    %v1367 = vld [vmem:[%s1366] sm:$0xf]
    %v1368 = vld [vmem:[%s1366 + $0x4] sm:$0xf]
    %v1369 = vld [vmem:[%s1366 + $0x8] sm:$0xf]
    %v1370 = vld [vmem:[%s1366 + $0xc] sm:$0xf]
    %v1375 = vunpack.c.l.b16 %v1367
    %v1376 = vunpack.c.l.b16 %v1368
    %v1377 = vunpack.c.l.b16 %v1369
    %v1378 = vunpack.c.l.b16 %v1370
    %v1379 = vpack.c.b16 %v1376, %v1375
    %v1380 = vpack.c.b16 %v1378, %v1377
    %1383 = vmatprep.subr.bf16.mxu0 0
    %1384 = vmatpush1.bf16.msra.mxu0 %v1379
    %1385 = vmatprep.subr.bf16.mxu0 0
    %1386 = vmatpush1.bf16.msra.mxu0 %v1380
    %1387 = vmatprep.subr.bf16.mxu0 0
    %1388 = vmatpush1.bf16.msra.mxu0 0
    %1389 = vmatprep.subr.bf16.mxu0 0
    %1390 = vmatpush1.bf16.msra.mxu0 0
    %1391 = vmatprep.subr.bf16.mxu0 0
    %1392 = vmatpush1.bf16.msra.mxu0 0
    %1393 = vmatprep.subr.bf16.mxu0 0
    %1394 = vmatpush1.bf16.msra.mxu0 0
    %1395 = vmatprep.subr.bf16.mxu0 0
    %1396 = vmatpush1.bf16.msra.mxu0 0
    %1397 = vmatprep.subr.bf16.mxu0 0
    %1398 = vmatpush1.bf16.msra.mxu0 0
    %1399 = vmatprep.subr.bf16.mxu0 0
    %1400 = vmatpush1.bf16.msra.mxu0 0
    %1401 = vmatprep.subr.bf16.mxu0 0
    %1402 = vmatpush1.bf16.msra.mxu0 0
    %1403 = vmatprep.subr.bf16.mxu0 0
    %1404 = vmatpush1.bf16.msra.mxu0 0
    %1405 = vmatprep.subr.bf16.mxu0 0
    %1406 = vmatpush1.bf16.msra.mxu0 0
    %1407 = vmatprep.subr.bf16.mxu0 0
    %1408 = vmatpush1.bf16.msra.mxu0 0
    %1409 = vmatprep.subr.bf16.mxu0 0
    %1410 = vmatpush1.bf16.msra.mxu0 0
    %1411 = vmatprep.subr.bf16.mxu0 0
    %1412 = vmatpush1.bf16.msra.mxu0 0
    %1413 = vmatprep.subr.bf16.mxu0 0
    %1414 = vmatpush1.bf16.msra.mxu0 0
    %1415 = vmatprep.mubr.bf16.mxu0 0
    %1416 = vmatmul.mubr.bf16.gmra.mrb[0].mxu0 %v51
    %v1417 = vpop.f32.mrb[0].mxu0
    %v1418 = vadd.f32 0.0, %v1417
    %v1419 = vpop.f32.mrb[0].mxu0
    %v1420 = vpop.f32.mrb[0].mxu0
    %v1421 = vadd.f32 0.0, %v1420
    %v1422 = vpop.f32.mrb[0].mxu0
    %1423 = vdwg.mxu0
    %s1424 = scalar_lea.vmem %s3, 48
    %v1425 = vld [vmem:[%s1424] sm:$0xf]
    %v1426 = vld [vmem:[%s1424 + $0x4] sm:$0xf]
    %v1427 = vld [vmem:[%s1424 + $0x8] sm:$0xf]
    %v1428 = vld [vmem:[%s1424 + $0xc] sm:$0xf]
    %v1433 = vunpack.c.l.b16 %v1425
    %v1434 = vunpack.c.l.b16 %v1426
    %v1435 = vunpack.c.l.b16 %v1427
    %v1436 = vunpack.c.l.b16 %v1428
    %v1437 = vpack.c.b16 %v1434, %v1433
    %v1438 = vpack.c.b16 %v1436, %v1435
    %1441 = vmatprep.subr.bf16.mxu0 0
    %1442 = vmatpush1.bf16.msra.mxu0 %v1437
    %1443 = vmatprep.subr.bf16.mxu0 0
    %1444 = vmatpush1.bf16.msra.mxu0 %v1438
    %1445 = vmatprep.subr.bf16.mxu0 0
    %1446 = vmatpush1.bf16.msra.mxu0 0
    %1447 = vmatprep.subr.bf16.mxu0 0
    %1448 = vmatpush1.bf16.msra.mxu0 0
    %1449 = vmatprep.subr.bf16.mxu0 0
    %1450 = vmatpush1.bf16.msra.mxu0 0
    %1451 = vmatprep.subr.bf16.mxu0 0
    %1452 = vmatpush1.bf16.msra.mxu0 0
    %1453 = vmatprep.subr.bf16.mxu0 0
    %1454 = vmatpush1.bf16.msra.mxu0 0
    %1455 = vmatprep.subr.bf16.mxu0 0
    %1456 = vmatpush1.bf16.msra.mxu0 0
    %1457 = vmatprep.subr.bf16.mxu0 0
    %1458 = vmatpush1.bf16.msra.mxu0 0
    %1459 = vmatprep.subr.bf16.mxu0 0
    %1460 = vmatpush1.bf16.msra.mxu0 0
    %1461 = vmatprep.subr.bf16.mxu0 0
    %1462 = vmatpush1.bf16.msra.mxu0 0
    %1463 = vmatprep.subr.bf16.mxu0 0
    %1464 = vmatpush1.bf16.msra.mxu0 0
    %1465 = vmatprep.subr.bf16.mxu0 0
    %1466 = vmatpush1.bf16.msra.mxu0 0
    %1467 = vmatprep.subr.bf16.mxu0 0
    %1468 = vmatpush1.bf16.msra.mxu0 0
    %1469 = vmatprep.subr.bf16.mxu0 0
    %1470 = vmatpush1.bf16.msra.mxu0 0
    %1471 = vmatprep.subr.bf16.mxu0 0
    %1472 = vmatpush1.bf16.msra.mxu0 0
    %1473 = vmatprep.mubr.bf16.mxu0 0
    %1474 = vmatmul.mubr.bf16.gmra.mrb[0].mxu0 %v51
    %v1475 = vpop.f32.mrb[0].mxu0
    %v1476 = vadd.f32 0.0, %v1475
    %v1477 = vpop.f32.mrb[0].mxu0
    %v1478 = vpop.f32.mrb[0].mxu0
    %v1479 = vadd.f32 0.0, %v1478
    %v1480 = vpop.f32.mrb[0].mxu0
    %1481 = vdwg.mxu0
    %v1482 = vpack.c.bf16 %v1360, %v1360
    %v1483 = vpack.c.bf16 %v1418, %v1418
    %v1484 = vpack.c.bf16 %v1476, %v1476
    %v1486 = vsel %vm211, %v1482, 0
    %v1489 = vsel %vm211, %v1483, 0
    %1491 = vmatprep.subr.bf16.mxu0 0
    %1492 = vmatpush1.bf16.xpose.msra.mxu0 %v1489
    %1493 = vmatprep.subr.bf16.mxu0 0
    %1494 = vmatpush1.bf16.xpose.msra.mxu0 0
    %1495 = vmatprep.subr.bf16.mxu0 0
    %1496 = vmatpush1.bf16.xpose.msra.mxu0 0
    %1497 = vmatprep.subr.bf16.mxu0 0
    %1498 = vmatpush1.bf16.xpose.msra.mxu0 0
    %1499 = vmatprep.subr.bf16.mxu0 0
    %1500 = vmatpush1.bf16.xpose.msra.mxu0 0
    %1501 = vmatprep.subr.bf16.mxu0 0
    %1502 = vmatpush1.bf16.xpose.msra.mxu0 0
    %1503 = vmatprep.subr.bf16.mxu0 0
    %1504 = vmatpush1.bf16.xpose.msra.mxu0 0
    %1505 = vmatprep.subr.bf16.mxu0 0
    %1506 = vmatpush1.bf16.xpose.msra.mxu0 0
    %1507 = vmatprep.subr.bf16.mxu0 0
    %1508 = vmatpush1.bf16.xpose.msra.mxu0 0
    %1509 = vmatprep.subr.bf16.mxu0 0
    %1510 = vmatpush1.bf16.xpose.msra.mxu0 0
    %1511 = vmatprep.subr.bf16.mxu0 0
    %1512 = vmatpush1.bf16.xpose.msra.mxu0 0
    %1513 = vmatprep.subr.bf16.mxu0 0
    %1514 = vmatpush1.bf16.xpose.msra.mxu0 0
    %1515 = vmatprep.subr.bf16.mxu0 0
    %1516 = vmatpush1.bf16.xpose.msra.mxu0 0
    %1517 = vmatprep.subr.bf16.mxu0 0
    %1518 = vmatpush1.bf16.xpose.msra.mxu0 0
    %1519 = vmatprep.subr.bf16.mxu0 0
    %1520 = vmatpush1.bf16.xpose.msra.mxu0 0
    %1521 = vmatprep.subr.bf16.mxu0 0
    %1522 = vmatpush1.bf16.xpose.msra.mxu0 0
    %1523 = vmatprep.mubr.bf16.mxu0 0
    %1524 = vmatmul.mubr.bf16.gmra.mrb[0].mxu0 %v1486
    %v1525 = vpop.f32.mrb[0].mxu0
    %v1526 = vadd.f32 0.0, %v1525
    %v1527 = vpop.f32.mrb[0].mxu0
    %v1528 = vpop.f32.mrb[0].mxu0
    %v1529 = vpop.f32.mrb[0].mxu0
    %1530 = vdwg.mxu0
    %v1531 = vsel %vm32, %v1526, -1e+30
    %v1532 = vsel %vm211, %v1531, -inf
    %1533 = vmax.xlane.f32.xlu0 %v1532
    %v1534 = vpop.xlane.xlu0 %1533
    %v1535 = vsub.f32 %v1531, %v1534
    %v1536 = vmul.f32 %v1535, 1.442695
    %v1537 = vpow.pop %v1536
    %v1538 = vsel %vm211, %v1537, 0.0
    %1539 = vadd.xlane.f32.xlu0 %v1538
    %v1540 = vpop.xlane.xlu0 %1539
    %v1541 = vrcp.pop %v1540
    %v1542 = vmul.f32 %v1537, %v1541
    %v1543 = vpack.c.bf16 %v1542, %v1542
    %v1545 = vsel %vm211, %v1543, 0
    %v1548 = vsel %vm274, %v1484, 0
    %1550 = vmatprep.subr.bf16.mxu0 0
    %1551 = vmatpush1.bf16.msra.mxu0 %v1548
    %1552 = vmatprep.subr.bf16.mxu0 0
    %1553 = vmatpush1.bf16.msra.mxu0 0
    %1554 = vmatprep.subr.bf16.mxu0 0
    %1555 = vmatpush1.bf16.msra.mxu0 0
    %1556 = vmatprep.subr.bf16.mxu0 0
    %1557 = vmatpush1.bf16.msra.mxu0 0
    %1558 = vmatprep.subr.bf16.mxu0 0
    %1559 = vmatpush1.bf16.msra.mxu0 0
    %1560 = vmatprep.subr.bf16.mxu0 0
    %1561 = vmatpush1.bf16.msra.mxu0 0
    %1562 = vmatprep.subr.bf16.mxu0 0
    %1563 = vmatpush1.bf16.msra.mxu0 0
    %1564 = vmatprep.subr.bf16.mxu0 0
    %1565 = vmatpush1.bf16.msra.mxu0 0
    %1566 = vmatprep.subr.bf16.mxu0 0
    %1567 = vmatpush1.bf16.msra.mxu0 0
    %1568 = vmatprep.subr.bf16.mxu0 0
    %1569 = vmatpush1.bf16.msra.mxu0 0
    %1570 = vmatprep.subr.bf16.mxu0 0
    %1571 = vmatpush1.bf16.msra.mxu0 0
    %1572 = vmatprep.subr.bf16.mxu0 0
    %1573 = vmatpush1.bf16.msra.mxu0 0
    %1574 = vmatprep.subr.bf16.mxu0 0
    %1575 = vmatpush1.bf16.msra.mxu0 0
    %1576 = vmatprep.subr.bf16.mxu0 0
    %1577 = vmatpush1.bf16.msra.mxu0 0
    %1578 = vmatprep.subr.bf16.mxu0 0
    %1579 = vmatpush1.bf16.msra.mxu0 0
    %1580 = vmatprep.subr.bf16.mxu0 0
    %1581 = vmatpush1.bf16.msra.mxu0 0
    %1582 = vmatprep.mubr.bf16.mxu0 0
    %1583 = vmatmul.mubr.bf16.gmra.mrb[0].mxu0 %v1545
    %v1584 = vpop.f32.mrb[0].mxu0
    %v1585 = vadd.f32 0.0, %v1584
    %v1586 = vpop.f32.mrb[0].mxu0
    %v1587 = vpop.f32.mrb[0].mxu0
    %v1588 = vpop.f32.mrb[0].mxu0
    %1589 = vdwg.mxu0
    %v1590 = vpack.c.bf16 %v1363, %v1363
    %v1591 = vpack.c.bf16 %v1421, %v1421
    %v1592 = vpack.c.bf16 %v1479, %v1479
    %v1594 = vsel %vm211, %v1590, 0
    %v1597 = vsel %vm211, %v1591, 0
    %1599 = vmatprep.subr.bf16.mxu0 0
    %1600 = vmatpush1.bf16.xpose.msra.mxu0 %v1597
    %1601 = vmatprep.subr.bf16.mxu0 0
    %1602 = vmatpush1.bf16.xpose.msra.mxu0 0
    %1603 = vmatprep.subr.bf16.mxu0 0
    %1604 = vmatpush1.bf16.xpose.msra.mxu0 0
    %1605 = vmatprep.subr.bf16.mxu0 0
    %1606 = vmatpush1.bf16.xpose.msra.mxu0 0
    %1607 = vmatprep.subr.bf16.mxu0 0
    %1608 = vmatpush1.bf16.xpose.msra.mxu0 0
    %1609 = vmatprep.subr.bf16.mxu0 0
    %1610 = vmatpush1.bf16.xpose.msra.mxu0 0
    %1611 = vmatprep.subr.bf16.mxu0 0
    %1612 = vmatpush1.bf16.xpose.msra.mxu0 0
    %1613 = vmatprep.subr.bf16.mxu0 0
    %1614 = vmatpush1.bf16.xpose.msra.mxu0 0
    %1615 = vmatprep.subr.bf16.mxu0 0
    %1616 = vmatpush1.bf16.xpose.msra.mxu0 0
    %1617 = vmatprep.subr.bf16.mxu0 0
    %1618 = vmatpush1.bf16.xpose.msra.mxu0 0
    %1619 = vmatprep.subr.bf16.mxu0 0
    %1620 = vmatpush1.bf16.xpose.msra.mxu0 0
    %1621 = vmatprep.subr.bf16.mxu0 0
    %1622 = vmatpush1.bf16.xpose.msra.mxu0 0
    %1623 = vmatprep.subr.bf16.mxu0 0
    %1624 = vmatpush1.bf16.xpose.msra.mxu0 0
    %1625 = vmatprep.subr.bf16.mxu0 0
    %1626 = vmatpush1.bf16.xpose.msra.mxu0 0
    %1627 = vmatprep.subr.bf16.mxu0 0
    %1628 = vmatpush1.bf16.xpose.msra.mxu0 0
    %1629 = vmatprep.subr.bf16.mxu0 0
    %1630 = vmatpush1.bf16.xpose.msra.mxu0 0
    %1631 = vmatprep.mubr.bf16.mxu0 0
    %1632 = vmatmul.mubr.bf16.gmra.mrb[0].mxu0 %v1594
    %v1633 = vpop.f32.mrb[0].mxu0
    %v1634 = vadd.f32 0.0, %v1633
    %v1635 = vpop.f32.mrb[0].mxu0
    %v1636 = vpop.f32.mrb[0].mxu0
    %v1637 = vpop.f32.mrb[0].mxu0
    %1638 = vdwg.mxu0
    %v1639 = vsel %vm32, %v1634, -1e+30
    %v1640 = vsel %vm211, %v1639, -inf
    %1641 = vmax.xlane.f32.xlu0 %v1640
    %v1642 = vpop.xlane.xlu0 %1641
    %v1643 = vsub.f32 %v1639, %v1642
    %v1644 = vmul.f32 %v1643, 1.442695
    %v1645 = vpow.pop %v1644
    %v1646 = vsel %vm211, %v1645, 0.0
    %1647 = vadd.xlane.f32.xlu0 %v1646
    %v1648 = vpop.xlane.xlu0 %1647
    %v1649 = vrcp.pop %v1648
    %v1650 = vmul.f32 %v1645, %v1649
    %v1651 = vpack.c.bf16 %v1650, %v1650
    %v1653 = vsel %vm211, %v1651, 0
    %v1656 = vsel %vm274, %v1592, 0
    %1658 = vmatprep.subr.bf16.mxu0 0
    %1659 = vmatpush1.bf16.msra.mxu0 %v1656
    %1660 = vmatprep.subr.bf16.mxu0 0
    %1661 = vmatpush1.bf16.msra.mxu0 0
    %1662 = vmatprep.subr.bf16.mxu0 0
    %1663 = vmatpush1.bf16.msra.mxu0 0
    %1664 = vmatprep.subr.bf16.mxu0 0
    %1665 = vmatpush1.bf16.msra.mxu0 0
    %1666 = vmatprep.subr.bf16.mxu0 0
    %1667 = vmatpush1.bf16.msra.mxu0 0
    %1668 = vmatprep.subr.bf16.mxu0 0
    %1669 = vmatpush1.bf16.msra.mxu0 0
    %1670 = vmatprep.subr.bf16.mxu0 0
    %1671 = vmatpush1.bf16.msra.mxu0 0
    %1672 = vmatprep.subr.bf16.mxu0 0
    %1673 = vmatpush1.bf16.msra.mxu0 0
    %1674 = vmatprep.subr.bf16.mxu0 0
    %1675 = vmatpush1.bf16.msra.mxu0 0
    %1676 = vmatprep.subr.bf16.mxu0 0
    %1677 = vmatpush1.bf16.msra.mxu0 0
    %1678 = vmatprep.subr.bf16.mxu0 0
    %1679 = vmatpush1.bf16.msra.mxu0 0
    %1680 = vmatprep.subr.bf16.mxu0 0
    %1681 = vmatpush1.bf16.msra.mxu0 0
    %1682 = vmatprep.subr.bf16.mxu0 0
    %1683 = vmatpush1.bf16.msra.mxu0 0
    %1684 = vmatprep.subr.bf16.mxu0 0
    %1685 = vmatpush1.bf16.msra.mxu0 0
    %1686 = vmatprep.subr.bf16.mxu0 0
    %1687 = vmatpush1.bf16.msra.mxu0 0
    %1688 = vmatprep.subr.bf16.mxu0 0
    %1689 = vmatpush1.bf16.msra.mxu0 0
    %1690 = vmatprep.mubr.bf16.mxu0 0
    %1691 = vmatmul.mubr.bf16.gmra.mrb[0].mxu0 %v1653
    %v1692 = vpop.f32.mrb[0].mxu0
    %v1693 = vadd.f32 0.0, %v1692
    %v1694 = vpop.f32.mrb[0].mxu0
    %v1695 = vpop.f32.mrb[0].mxu0
    %v1696 = vpop.f32.mrb[0].mxu0
    %1697 = vdwg.mxu0
    %v1698 = vpack.c.bf16 %v1693, %v1585
    %s1699 = scalar_lea.vmem %s4, 12
    %v1700 = vld [vmem:[%s1699] sm:$0xf]
    %v1702 = vsel %vm211, %v1698, 0
    %v1705 = vsel %vm274, %v1700, 0
    %1707 = vmatprep.subr.bf16.mxu0 0
    %1708 = vmatpush1.bf16.msra.mxu0 %v1705
    %1709 = vmatprep.subr.bf16.mxu0 0
    %1710 = vmatpush1.bf16.msra.mxu0 0
    %1711 = vmatprep.subr.bf16.mxu0 0
    %1712 = vmatpush1.bf16.msra.mxu0 0
    %1713 = vmatprep.subr.bf16.mxu0 0
    %1714 = vmatpush1.bf16.msra.mxu0 0
    %1715 = vmatprep.subr.bf16.mxu0 0
    %1716 = vmatpush1.bf16.msra.mxu0 0
    %1717 = vmatprep.subr.bf16.mxu0 0
    %1718 = vmatpush1.bf16.msra.mxu0 0
    %1719 = vmatprep.subr.bf16.mxu0 0
    %1720 = vmatpush1.bf16.msra.mxu0 0
    %1721 = vmatprep.subr.bf16.mxu0 0
    %1722 = vmatpush1.bf16.msra.mxu0 0
    %1723 = vmatprep.subr.bf16.mxu0 0
    %1724 = vmatpush1.bf16.msra.mxu0 0
    %1725 = vmatprep.subr.bf16.mxu0 0
    %1726 = vmatpush1.bf16.msra.mxu0 0
    %1727 = vmatprep.subr.bf16.mxu0 0
    %1728 = vmatpush1.bf16.msra.mxu0 0
    %1729 = vmatprep.subr.bf16.mxu0 0
    %1730 = vmatpush1.bf16.msra.mxu0 0
    %1731 = vmatprep.subr.bf16.mxu0 0
    %1732 = vmatpush1.bf16.msra.mxu0 0
    %1733 = vmatprep.subr.bf16.mxu0 0
    %1734 = vmatpush1.bf16.msra.mxu0 0
    %1735 = vmatprep.subr.bf16.mxu0 0
    %1736 = vmatpush1.bf16.msra.mxu0 0
    %1737 = vmatprep.subr.bf16.mxu0 0
    %1738 = vmatpush1.bf16.msra.mxu0 0
    %1739 = vmatprep.mubr.bf16.mxu0 0
    %1740 = vmatmul.mubr.bf16.gmra.mrb[0].mxu0 %v1702
    %v1741 = vpop.f32.mrb[0].mxu0
    %v1742 = vadd.f32 0.0, %v1741
    %v1743 = vpop.f32.mrb[0].mxu0
    %v1744 = vpop.f32.mrb[0].mxu0
    %v1745 = vadd.f32 0.0, %v1744
    %v1746 = vpop.f32.mrb[0].mxu0
    %1747 = vdwg.mxu0
    %v1749 = vsel %vm211, %v426, 0
    %v1752 = vsel %vm274, %v427, 0
    %1754 = vmatprep.subr.bf16.mxu0 0
    %1755 = vmatpush1.bf16.msra.mxu0 %v1752
    %1756 = vmatprep.subr.bf16.mxu0 0
    %1757 = vmatpush1.bf16.msra.mxu0 0
    %1758 = vmatprep.subr.bf16.mxu0 0
    %1759 = vmatpush1.bf16.msra.mxu0 0
    %1760 = vmatprep.subr.bf16.mxu0 0
    %1761 = vmatpush1.bf16.msra.mxu0 0
    %1762 = vmatprep.subr.bf16.mxu0 0
    %1763 = vmatpush1.bf16.msra.mxu0 0
    %1764 = vmatprep.subr.bf16.mxu0 0
    %1765 = vmatpush1.bf16.msra.mxu0 0
    %1766 = vmatprep.subr.bf16.mxu0 0
    %1767 = vmatpush1.bf16.msra.mxu0 0
    %1768 = vmatprep.subr.bf16.mxu0 0
    %1769 = vmatpush1.bf16.msra.mxu0 0
    %1770 = vmatprep.subr.bf16.mxu0 0
    %1771 = vmatpush1.bf16.msra.mxu0 0
    %1772 = vmatprep.subr.bf16.mxu0 0
    %1773 = vmatpush1.bf16.msra.mxu0 0
    %1774 = vmatprep.subr.bf16.mxu0 0
    %1775 = vmatpush1.bf16.msra.mxu0 0
    %1776 = vmatprep.subr.bf16.mxu0 0
    %1777 = vmatpush1.bf16.msra.mxu0 0
    %1778 = vmatprep.subr.bf16.mxu0 0
    %1779 = vmatpush1.bf16.msra.mxu0 0
    %1780 = vmatprep.subr.bf16.mxu0 0
    %1781 = vmatpush1.bf16.msra.mxu0 0
    %1782 = vmatprep.subr.bf16.mxu0 0
    %1783 = vmatpush1.bf16.msra.mxu0 0
    %1784 = vmatprep.subr.bf16.mxu0 0
    %1785 = vmatpush1.bf16.msra.mxu0 0
    %1786 = vmatprep.mubr.bf16.mxu0 0
    %1787 = vmatmul.mubr.bf16.gmra.mrb[0].mxu0 %v1749
    %v1788 = vpop.f32.mrb[0].mxu0
    %v1789 = vadd.f32 %v862, %v1788
    %v1790 = vpop.f32.mrb[0].mxu0
    %v1791 = vpop.f32.mrb[0].mxu0
    %v1792 = vadd.f32 %v865, %v1791
    %v1793 = vpop.f32.mrb[0].mxu0
    %1794 = vdwg.mxu0
    %v1795 = vadd.f32 %v1789, %v1302
    %v1796 = vadd.f32 %v1792, %v1305
    %v1797 = vadd.f32 %v1795, %v1742
    %v1798 = vadd.f32 %v1796, %v1745
    %v1799 = vld [vmem:[%s5] sm:$0x1]
    %v1801 = vlaneseq
    %v1802 = vshrl.u32 %v1801, 7
    %v1803 = vsub.s32 0, %v1802
    %v1804 = vrot.slane %v1799, %v1803
    %v1806 = vadd.f32 %v1797, %v1804
    %v1807 = vadd.f32 %v1798, %v1804
    %1808 = vst.msk [vmem:[#allocation2] sm:$0xff] %vm49, %v1806
    %1809 = vst.msk [vmem:[#allocation2 + $0x8] sm:$0xff] %vm49, %v1807
    // Predicated region
    $region26: #{tpu_custom_call.1} parent=1 // pred_check
      _
    $region27: #{tpu_custom_call.1} parent=1 // pred_check_branch
      %1811 = sbr.rel (0) target = $region29
    $region28: #{tpu_custom_call.1} parent=1 // pred_region
      %s1813 = ssub.s32 256, 256
      %1814 = vsyncadd [#allocation3], %s1813
      %s1815 = sshll.u32 [#allocation2], 4
      %s1816 = int_to_ptr.vmem [resolvable:$true] %s1815
      %1821 = dma.vmem_to_hbm [thread:$0]  %s1816, 256, %s6, [#allocation3], 128, 128, 8
    $region29: #{tpu_custom_call.1} parent=1 // pred_fallthru
      _
    // Predicated region
    $region30: #{tpu_custom_call.1} parent=1 // pred_check
      _
    $region31: #{tpu_custom_call.1} parent=1 // pred_check_branch
      %1823 = sbr.rel (0) target = $region33
    $region32: #{tpu_custom_call.1} parent=1 // pred_region
      %1824 = dma.done [#allocation3], 256
    $region33: #{tpu_custom_call.1} parent=1 // pred_fallthru
      _
    %1825 = vsyncpa [#allocation3], 1

</llo_original>
